<compile_context>
chip_gen: v7x
topology: tpu7x:2x2x1
jax: 0.10.0
libtpu: 0.0.40
codegen_flags: <defaults>
</compile_context>

<pallas_src>
import functools

import jax
import jax.numpy as jnp
from jax import lax
from jax.experimental import pallas as pl
from jax.experimental.pallas import tpu as pltpu


def _accum_kernel(x_ref, score_ref, batch_ref, cbt_ref, cb_ref, cbsq_ref,
                  csum_ref, rsum_ref, cnt_ref, cmt_ref,
                  *, n_valid, nodes_per_core):
    """Streams TILE_N nodes per step; accumulates per-graph partial sums per core."""
    c = pl.program_id(0)          # node-range split (parallel; maps to TCs on v7x)
    i = pl.program_id(1)          # step within this core's node range (reduction)
    tile_n = x_ref.shape[0]
    k_pad = cb_ref.shape[0]
    num_graphs = csum_ref.shape[0]

    @pl.when(i == 0)
    def _():
        csum_ref[...] = jnp.zeros_like(csum_ref)
        rsum_ref[...] = jnp.zeros_like(rsum_ref)
        cnt_ref[...] = jnp.zeros_like(cnt_ref)
        cmt_ref[...] = jnp.zeros_like(cmt_ref)

    x_in = x_ref[...]                       # [TILE_N, D_pad], matmul dtype (bf16 fast path)
    mm_dtype = x_in.dtype
    x = x_in.astype(jnp.float32)

    # ---------------- VectorQuantize: nearest codebook entry ----------------------
    # argmin_k ||x - cb_k||^2 == argmin_k (||cb_k||^2 - 2 x.cb_k)   (row-const ||x||^2 dropped)
    cross = jnp.dot(x_in, cbt_ref[...], preferred_element_type=jnp.float32)   # [TILE_N, K_pad]
    dist = cbsq_ref[...] - 2.0 * cross      # padded K columns carry 1e30 -> never selected
    min_d = jnp.min(dist, axis=-1, keepdims=True)
    iota_k = lax.broadcasted_iota(jnp.int32, (tile_n, k_pad), 1)
    masked = jnp.where(dist <= min_d, iota_k, k_pad)
    idx = jnp.min(masked, axis=-1, keepdims=True)               # first arg-min
    onehot = (iota_k == idx).astype(mm_dtype)
    quant = jnp.dot(onehot, cb_ref[...], preferred_element_type=jnp.float32)  # [TILE_N, D_pad]

    # valid-row mask: excludes rows added by padding N up to the grid size
    row = lax.broadcasted_iota(jnp.int32, (tile_n, 1), 0) + (c * nodes_per_core + i * tile_n)
    valid = (row < n_valid).astype(jnp.float32)

    # commitment loss partial sum over valid rows of ||quant - x||^2
    diff = quant - x
    d2 = jnp.sum(diff * diff, axis=-1, keepdims=True)            # [TILE_N, 1]
    cmt_ref[...] += jnp.sum(d2 * valid, axis=0, keepdims=True)   # [1, 1]

    # residual + causal split; spurious side recovered as (residual - causal) at finalize
    score = score_ref[...].astype(jnp.float32)
    res_valid = (x + quant) * valid
    c_node = res_valid * score

    # per-graph accumulation (global_mean_pool numerators + counts)
    batch = batch_ref[...]                                       # [1, TILE_N] int32
    g_iota = lax.broadcasted_iota(jnp.int32, (num_graphs, tile_n), 0)
    assign = (g_iota == batch).astype(jnp.float32)               # padded rows: id==B -> no match
    assign_mm = assign.astype(mm_dtype)
    csum_ref[...] += jnp.dot(assign_mm, c_node.astype(mm_dtype),
                             preferred_element_type=jnp.float32)
    rsum_ref[...] += jnp.dot(assign_mm, res_valid.astype(mm_dtype),
                             preferred_element_type=jnp.float32)
    cnt_ref[...] += jnp.sum(assign, axis=-1, keepdims=True)


def _finalize_kernel(csum_ref, rsum_ref, cnt_ref, cmtp_ref,
                     w1_ref, b1_ref, gamma_ref, beta_ref, mu_ref, var_ref,
                     w2_ref, b2_ref,
                     logit_ref, cg_ref, sg_ref, cmt_ref,
                     *, n_valid, d_real, commitment_weight):
    """Combine per-core partials, mean-pool, commitment scale, classifier MLP."""
    c_sum = jnp.sum(csum_ref[...], axis=0)   # (B, D_pad)
    r_sum = jnp.sum(rsum_ref[...], axis=0)
    cnt = jnp.sum(cnt_ref[...], axis=0)      # (B, 1)
    cmt = jnp.sum(cmtp_ref[...], axis=0)     # (1, 1)

    pooled_c = c_sum / cnt                   # NOTE: empty graphs (cnt==0) -> inf, same as reference
    pooled_s = (r_sum - c_sum) / cnt
    cg_ref[...] = pooled_c
    sg_ref[...] = pooled_s
    cmt_ref[...] = cmt * (commitment_weight / (n_valid * d_real))

    # classifier: Linear(D, 2D) -> BatchNorm1d (eval running stats) -> ReLU -> Linear(2D, 1)
    h = jnp.dot(pooled_c, w1_ref[...], preferred_element_type=jnp.float32) + b1_ref[...]
    h = (h - mu_ref[...]) * lax.rsqrt(var_ref[...] + 1e-5) * gamma_ref[...] + beta_ref[...]
    h = jnp.maximum(h, 0.0)
    logit_ref[...] = jnp.dot(h, w2_ref[...], preferred_element_type=jnp.float32) + b2_ref[...]


def _rup(a, m):
    return (a + m - 1) // m * m


def _stream_spec(shape, index_map, buffer_count):
    if buffer_count == 2:                     # default double-buffering
        return pl.BlockSpec(shape, index_map)
    return pl.BlockSpec(shape, index_map, pipeline_mode=pl.Buffered(buffer_count))


def discrete_encoder_pallas(node_feat, score, batch_ids, num_graphs, params,
                            commitment_weight=0.25, tile_n=512, num_cores=1,
                            buffer_count=2):
    """node_feat: [N, D] (GNN output), score: [N, D] (Separator output), batch_ids: [N] int.

    Returns (c_logit [B,1], c_graph_feat [B,D], s_graph_feat [B,D], cmt_loss [1,1]).
    Pass node_feat / score (and codebook) as bf16 for the half-bandwidth, native-MXU path.
    """
    N, D = node_feat.shape
    B = int(num_graphs)
    K = params["codebook"].shape[0]
    H = params["w1"].shape[1]                 # = 2*D
    C = max(1, int(num_cores))
    f32 = jnp.float32

    # Tile over nodes: multiple of 128, capped near N.
    # NOTE(v7x): 64 MiB physical VMEM -> keep tile_n <= ~1024 per core for large D
    #            (halve it when num_cores=2); v5e/v6e (128 MiB physical) can go 2048.
    tile_n = max(128, _rup(min(int(tile_n), _rup(N, 128)), 128))
    chunk = C * tile_n
    N_pad = _rup(N, chunk)
    nodes_per_core = N_pad // C
    steps_per_core = nodes_per_core // tile_n

    D_pad = _rup(D, 128)
    # v6e/v7x MXU is 256 wide: pad large codebooks to a 256 multiple; tiny codebooks
    # stay at 128 (the kernel is bandwidth-bound there anyway).
    K_pad = _rup(K, 256) if K > 128 else _rup(K, 128)
    H_pad = _rup(H, 128)

    mm_dtype = node_feat.dtype                # matmul dtype follows the node stream

    # ------------------------------ pad inputs / params ---------------------------
    x_p = jnp.zeros((N_pad, D_pad), mm_dtype).at[:N, :D].set(node_feat)
    # keep score in its own (ideally bf16) dtype: it is the largest HBM stream
    s_p = jnp.zeros((N_pad, D_pad), score.dtype).at[:N, :D].set(score)
    b_p = jnp.full((1, N_pad), B, jnp.int32).at[0, :N].set(
        batch_ids.reshape(-1).astype(jnp.int32))

    cb = params["codebook"].astype(mm_dtype)
    cb_p = jnp.zeros((K_pad, D_pad), mm_dtype).at[:K, :D].set(cb)
    cbt_p = jnp.transpose(cb_p)                                      # pre-transposed [D_pad, K_pad]
    cb_f32 = cb.astype(f32)
    cb_sq = jnp.sum(cb_f32 * cb_f32, axis=-1)
    cbsq_p = jnp.full((1, K_pad), 1e30, f32).at[0, :K].set(cb_sq)    # padded rows never win

    w1_p = jnp.zeros((D_pad, H_pad), f32).at[:D, :H].set(params["w1"].astype(f32))
    b1_p = jnp.zeros((1, H_pad), f32).at[0, :H].set(params["b1"].reshape(-1).astype(f32))
    g_p = jnp.zeros((1, H_pad), f32).at[0, :H].set(params["gamma"].reshape(-1).astype(f32))
    be_p = jnp.zeros((1, H_pad), f32).at[0, :H].set(params["beta"].reshape(-1).astype(f32))
    mu_p = jnp.zeros((1, H_pad), f32).at[0, :H].set(params["mean"].reshape(-1).astype(f32))
    var_p = jnp.ones((1, H_pad), f32).at[0, :H].set(params["var"].reshape(-1).astype(f32))
    w2_p = jnp.zeros((H_pad, 1), f32).at[:H, :].set(params["w2"].astype(f32))
    b2_p = params["b2"].reshape(1, 1).astype(f32)

    # ------------------------------ pass 1: streamed accumulation -----------------
    node_map = lambda c, i: (c * steps_per_core + i, 0)
    whole = lambda c, i: (0, 0)

    in_specs = [
        _stream_spec((tile_n, D_pad), node_map, buffer_count),     # node_feat (streamed)
        _stream_spec((tile_n, D_pad), node_map, buffer_count),     # score     (streamed)
        pl.BlockSpec((1, tile_n), lambda c, i: (0, c * steps_per_core + i)),  # batch ids
        pl.BlockSpec((D_pad, K_pad), whole),                       # codebook^T (resident)
        pl.BlockSpec((K_pad, D_pad), whole),                       # codebook   (resident)
        pl.BlockSpec((1, K_pad), whole),                           # ||cb||^2
    ]
    out_specs = (
        pl.BlockSpec((None, B, D_pad), lambda c, i: (c, 0, 0)),    # causal partial sums
        pl.BlockSpec((None, B, D_pad), lambda c, i: (c, 0, 0)),    # residual partial sums
        pl.BlockSpec((None, B, 1), lambda c, i: (c, 0, 0)),        # per-graph node counts
        pl.BlockSpec((None, 1, 1), lambda c, i: (c, 0, 0)),        # commitment partial sum
    )

    x_item = jnp.dtype(mm_dtype).itemsize
    s_item = jnp.dtype(score.dtype).itemsize
    est = (buffer_count * tile_n * D_pad * (x_item + s_item)      # streamed node + score tiles
           + buffer_count * tile_n * 4                             # batch-id tile
           + 2 * K_pad * D_pad * x_item + K_pad * 4                # resident codebooks + ||cb||^2
           + 2 * (2 * B * D_pad * 4 + B * 4 + 4))                  # resident accumulator blocks
    vmem_limit = int(min(max(2 * est + (4 << 20), 32 << 20), 48 << 20))

    flops = int(4 * N_pad * K_pad * D_pad            # distance cross + one-hot gather
                + 4 * B * N_pad * D_pad              # two pooling matmuls
                + 2 * B * D_pad * H_pad)             # classifier (finalize)
    bytes_accessed = int(N_pad * D_pad * (x_item + s_item) + N_pad * 4
                         + 2 * K_pad * D_pad * x_item + 2 * C * B * D_pad * 4)

    csum, rsum, cnt, cmtp = pl.pallas_call(
        functools.partial(_accum_kernel, n_valid=N, nodes_per_core=nodes_per_core),
        out_shape=(
            jax.ShapeDtypeStruct((C, B, D_pad), f32),
            jax.ShapeDtypeStruct((C, B, D_pad), f32),
            jax.ShapeDtypeStruct((C, B, 1), f32),
            jax.ShapeDtypeStruct((C, 1, 1), f32),
        ),
        grid_spec=pltpu.PrefetchScalarGridSpec(
            num_scalar_prefetch=0,
            grid=(C, steps_per_core),
            in_specs=in_specs,
            out_specs=out_specs,
        ),
        compiler_params=pltpu.CompilerParams(
            dimension_semantics=("parallel", "arbitrary"),   # core split x node reduction
            vmem_limit_bytes=vmem_limit),
        cost_estimate=pl.CostEstimate(flops=flops, transcendentals=0,
                                      bytes_accessed=bytes_accessed),
    )(x_p, s_p, b_p, cbt_p, cb_p, cbsq_p)

    # ------------------------------ pass 2: tiny combine + classifier --------------
    w3 = lambda i: (0, 0, 0)
    w2m = lambda i: (0, 0)
    fin_in_specs = [
        pl.BlockSpec((C, B, D_pad), w3), pl.BlockSpec((C, B, D_pad), w3),
        pl.BlockSpec((C, B, 1), w3), pl.BlockSpec((C, 1, 1), w3),
        pl.BlockSpec((D_pad, H_pad), w2m), pl.BlockSpec((1, H_pad), w2m),
        pl.BlockSpec((1, H_pad), w2m), pl.BlockSpec((1, H_pad), w2m),
        pl.BlockSpec((1, H_pad), w2m), pl.BlockSpec((1, H_pad), w2m),
        pl.BlockSpec((H_pad, 1), w2m), pl.BlockSpec((1, 1), w2m),
    ]
    fin_out_specs = (
        pl.BlockSpec((B, 1), w2m), pl.BlockSpec((B, D_pad), w2m),
        pl.BlockSpec((B, D_pad), w2m), pl.BlockSpec((1, 1), w2m),
    )
    logit, cg, sg, cmt = pl.pallas_call(
        functools.partial(_finalize_kernel, n_valid=N, d_real=D,
                          commitment_weight=float(commitment_weight)),
        out_shape=(
            jax.ShapeDtypeStruct((B, 1), f32),
            jax.ShapeDtypeStruct((B, D_pad), f32),
            jax.ShapeDtypeStruct((B, D_pad), f32),
            jax.ShapeDtypeStruct((1, 1), f32),
        ),
        grid=(1,),
        in_specs=fin_in_specs,
        out_specs=fin_out_specs,
    )(csum, rsum, cnt, cmtp, w1_p, b1_p, g_p, be_p, mu_p, var_p, w2_p, b2_p)

    return logit, cg[:, :D], sg[:, :D], cmt


def discrete_encoder_ref(node_feat, score, batch_ids, num_graphs, params,
                         commitment_weight=0.25):
    """Plain-JAX reference for correctness checking."""
    x = node_feat.astype(jnp.float32)
    cb = params["codebook"].astype(jnp.float32)
    dist = (jnp.sum(x * x, -1, keepdims=True)
            - 2.0 * x @ cb.T
            + jnp.sum(cb * cb, -1)[None, :])
    idx = jnp.argmin(dist, axis=-1)
    quant = cb[idx]
    cmt = commitment_weight * jnp.mean((quant - x) ** 2)
    res = x + quant
    sc = score.astype(jnp.float32)
    c_node = res * sc
    s_node = res * (1.0 - sc)
    b = batch_ids.reshape(-1)
    assign = (jnp.arange(num_graphs)[:, None] == b[None, :]).astype(jnp.float32)
    counts = assign.sum(-1, keepdims=True)
    cg = assign @ c_node / counts
    sg = assign @ s_node / counts
    h = cg @ params["w1"] + params["b1"]
    h = ((h - params["mean"]) * jax.lax.rsqrt(params["var"] + 1e-5)
         * params["gamma"] + params["beta"])
    h = jnp.maximum(h, 0.0)
    logit = h @ params["w2"] + params["b2"]
    return logit, cg, sg, cmt.reshape(1, 1)


if __name__ == "__main__":
    # Small shapes: N=300 nodes, D=32 emb_dim, K=16 codebook entries, B=2 graphs.
    N, D, K, B = 300, 32, 16, 2
    commitment_weight = 0.25

    key = jax.random.PRNGKey(0)
    ks = jax.random.split(key, 8)

    node_feat = jax.random.normal(ks[0], (N, D), jnp.float32)      # stand-in GNN output
    score = jax.random.uniform(ks[1], (N, D), jnp.float32)         # stand-in separator output
    batch_ids = jnp.concatenate([jnp.zeros((N // 2,), jnp.int32),
                                 jnp.ones((N - N // 2,), jnp.int32)])

    params = {
        "codebook": jax.random.normal(ks[2], (K, D), jnp.float32),
        # classifier: Linear(D, 2D) -> BatchNorm1d(2D) -> ReLU -> Linear(2D, 1)
        "w1": jax.random.normal(ks[3], (D, 2 * D), jnp.float32) / jnp.sqrt(D),
        "b1": jax.random.normal(ks[4], (1, 2 * D), jnp.float32) * 0.01,
        "gamma": jnp.ones((1, 2 * D), jnp.float32),
        "beta": jnp.zeros((1, 2 * D), jnp.float32),
        "mean": jnp.zeros((1, 2 * D), jnp.float32),     # BN running stats (eval mode)
        "var": jnp.ones((1, 2 * D), jnp.float32),
        "w2": jax.random.normal(ks[5], (2 * D, 1), jnp.float32) / jnp.sqrt(2 * D),
        "b2": jax.random.normal(ks[6], (1, 1), jnp.float32) * 0.01,
    }

    ref = discrete_encoder_ref(node_feat, score, batch_ids, B, params, commitment_weight)

    # f32 path, exact against the plain-JAX reference; num_cores=2 exercises the
    # per-core partial-sum split (maps onto both TensorCores on v7x, a loop elsewhere).
    out = discrete_encoder_pallas(node_feat, score, batch_ids, B, params,
                                  commitment_weight, tile_n=128, num_cores=2)
    out = jax.block_until_ready(out)
    for o, r in zip(out, ref):
        assert o.shape == r.shape, (o.shape, r.shape)
        assert jnp.allclose(o, r, atol=1e-4, rtol=1e-4), (o, r)

    # bf16 fast path (half HBM traffic on the node/score streams, native MXU dtype).
    # Smoke-check only: bf16 rounding can legitimately flip the arg-min for
    # near-tied codebook rows, so an exact comparison is not meaningful.
    out_bf16 = discrete_encoder_pallas(node_feat.astype(jnp.bfloat16),
                                       score.astype(jnp.bfloat16),
                                       batch_ids, B, params,
                                       commitment_weight, tile_n=128, num_cores=1)
    out_bf16 = jax.block_until_ready(out_bf16)
    for o, r in zip(out_bf16, ref):
        assert o.shape == r.shape, (o.shape, r.shape)
        assert bool(jnp.all(jnp.isfinite(o)))

    print("KERNEL_OK")
</pallas_src>

<mosaic_0001>
module attributes {stable_mosaic.version = 11 : i64} {
  func.func @_accum_kernel(%arg0: i32, %arg1: i32, %arg2: memref<128x128xf32, #tpu.memory_space<vmem>>, %arg3: memref<128x128xf32, #tpu.memory_space<vmem>>, %arg4: memref<1x128xi32, #tpu.memory_space<vmem>>, %arg5: memref<128x128xf32, #tpu.memory_space<vmem>>, %arg6: memref<128x128xf32, #tpu.memory_space<vmem>>, %arg7: memref<1x128xf32, #tpu.memory_space<vmem>>, %arg8: memref<1x2x128xf32, #tpu.memory_space<vmem>>, %arg9: memref<1x2x128xf32, #tpu.memory_space<vmem>>, %arg10: memref<1x2x1xf32, #tpu.memory_space<vmem>>, %arg11: memref<1x1x1xf32, #tpu.memory_space<vmem>>) attributes {dimension_semantics = [#tpu.dimension_semantics<parallel>, #tpu.dimension_semantics<arbitrary>], iteration_bounds = array<i64: 2, 2>, scalar_prefetch = 0 : i64, scratch_operands = 0 : i64, tpu.core_type = #tpu.core_type<tc>, window_params = [{transform_indices = @transform_0, window_bounds = array<i64: 128, 128>}, {transform_indices = @transform_1, window_bounds = array<i64: 128, 128>}, {transform_indices = @transform_2, window_bounds = array<i64: 1, 128>}, {pipeline_mode = #tpu.pipeline_mode<synchronous>, transform_indices = @transform_3, window_bounds = array<i64: 128, 128>}, {pipeline_mode = #tpu.pipeline_mode<synchronous>, transform_indices = @transform_4, window_bounds = array<i64: 128, 128>}, {pipeline_mode = #tpu.pipeline_mode<synchronous>, transform_indices = @transform_5, window_bounds = array<i64: 1, 128>}, {transform_indices = @transform_6, window_bounds = array<i64: 1, 2, 128>}, {transform_indices = @transform_7, window_bounds = array<i64: 1, 2, 128>}, {transform_indices = @transform_8, window_bounds = array<i64: 1, 2, 1>}, {transform_indices = @transform_9, window_bounds = array<i64: 1, 1, 1>}]} {
    %c0_i32 = arith.constant 0 : i32
    %0 = arith.cmpi eq, %arg1, %c0_i32 : i32
    %1 = arith.extui %0 : i1 to i32
    %c0_i32_0 = arith.constant 0 : i32
    %2 = arith.cmpi ne, %1, %c0_i32_0 : i32
    scf.if %2 {
      %cst_46 = arith.constant 0.000000e+00 : f32
      %82 = vector.broadcast %cst_46 : f32 to vector<2x128xf32>
      %c0_47 = arith.constant 0 : index
      %c0_48 = arith.constant 0 : index
      %c0_49 = arith.constant 0 : index
      %83 = vector.load %arg8[%c0_47, %c0_48, %c0_49] : memref<1x2x128xf32, #tpu.memory_space<vmem>>, vector<1x2x128xf32>
      %84 = vector.shape_cast %83 : vector<1x2x128xf32> to vector<2x128xf32>
      %85 = vector.shape_cast %82 : vector<2x128xf32> to vector<1x2x128xf32>
      tpu.vector_store %arg8[%c0_47, %c0_48, %c0_49], %85 {strides = array<i32>} : memref<1x2x128xf32, #tpu.memory_space<vmem>>, vector<1x2x128xf32>,
      %cst_50 = arith.constant 0.000000e+00 : f32
      %86 = vector.broadcast %cst_50 : f32 to vector<2x128xf32>
      %c0_51 = arith.constant 0 : index
      %c0_52 = arith.constant 0 : index
      %c0_53 = arith.constant 0 : index
      %87 = vector.load %arg9[%c0_51, %c0_52, %c0_53] : memref<1x2x128xf32, #tpu.memory_space<vmem>>, vector<1x2x128xf32>
      %88 = vector.shape_cast %87 : vector<1x2x128xf32> to vector<2x128xf32>
      %89 = vector.shape_cast %86 : vector<2x128xf32> to vector<1x2x128xf32>
      tpu.vector_store %arg9[%c0_51, %c0_52, %c0_53], %89 {strides = array<i32>} : memref<1x2x128xf32, #tpu.memory_space<vmem>>, vector<1x2x128xf32>,
      %cst_54 = arith.constant 0.000000e+00 : f32
      %90 = vector.broadcast %cst_54 : f32 to vector<2x1xf32>
      %c0_55 = arith.constant 0 : index
      %c0_56 = arith.constant 0 : index
      %c0_57 = arith.constant 0 : index
      %91 = vector.load %arg10[%c0_55, %c0_56, %c0_57] : memref<1x2x1xf32, #tpu.memory_space<vmem>>, vector<1x2x1xf32>
      %92 = vector.shape_cast %91 : vector<1x2x1xf32> to vector<2x1xf32>
      %93 = vector.shape_cast %90 : vector<2x1xf32> to vector<1x2x1xf32>
      tpu.vector_store %arg10[%c0_55, %c0_56, %c0_57], %93 {strides = array<i32>} : memref<1x2x1xf32, #tpu.memory_space<vmem>>, vector<1x2x1xf32>,
      %cst_58 = arith.constant 0.000000e+00 : f32
      %94 = vector.broadcast %cst_58 : f32 to vector<1x1xf32>
      %c0_59 = arith.constant 0 : index
      %c0_60 = arith.constant 0 : index
      %c0_61 = arith.constant 0 : index
      %95 = vector.load %arg11[%c0_59, %c0_60, %c0_61] : memref<1x1x1xf32, #tpu.memory_space<vmem>>, vector<1x1x1xf32>
      %96 = vector.shape_cast %95 : vector<1x1x1xf32> to vector<1x1xf32>
      %97 = vector.shape_cast %94 : vector<1x1xf32> to vector<1x1x1xf32>
      tpu.vector_store %arg11[%c0_59, %c0_60, %c0_61], %97 {strides = array<i32>} : memref<1x1x1xf32, #tpu.memory_space<vmem>>, vector<1x1x1xf32>,
    } else {
    }
    %c0 = arith.constant 0 : index
    %c0_1 = arith.constant 0 : index
    %3 = vector.load %arg2[%c0, %c0_1] : memref<128x128xf32, #tpu.memory_space<vmem>>, vector<128x128xf32>
    %c0_2 = arith.constant 0 : index
    %c0_3 = arith.constant 0 : index
    %4 = vector.load %arg5[%c0_2, %c0_3] : memref<128x128xf32, #tpu.memory_space<vmem>>, vector<128x128xf32>
    %cst = arith.constant dense<0.000000e+00> : vector<128x128xf32>
    %5 = tpu.matmul %3, %4, %cst {dimension_numbers = #tpu.dot_dimension_numbers<[1], [0], [0], [1], [0, 0, 1, 1], [], []>} : vector<128x128xf32>, vector<128x128xf32>, vector<128x128xf32> -> vector<128x128xf32>
    %c0_4 = arith.constant 0 : index
    %c0_5 = arith.constant 0 : index
    %6 = vector.load %arg7[%c0_4, %c0_5] : memref<1x128xf32, #tpu.memory_space<vmem>>, vector<1x128xf32>
    %cst_6 = arith.constant 2.000000e+00 : f32
    %7 = vector.broadcast %cst_6 : f32 to vector<128x128xf32>
    %8 = arith.mulf %7, %5 : vector<128x128xf32>
    %9 = vector.broadcast %6 : vector<1x128xf32> to vector<128x128xf32>
    %10 = arith.subf %9, %8 : vector<128x128xf32>
    %cst_7 = arith.constant dense<0x7F800000> : vector<128xf32>
    %11 = vector.multi_reduction <minimumf>, %10, %cst_7 [1] : vector<128x128xf32> to vector<128xf32>
    %12 = vector.shape_cast %11 : vector<128xf32> to vector<128x1xf32>
    %13 = tpu.iota {dimensions = array<i32: 1>} : vector<128x128xi32>
    %14 = vector.broadcast %12 : vector<128x1xf32> to vector<128x128xf32>
    %15 = arith.cmpf ole, %10, %14 : vector<128x128xf32>
    %c128_i32 = arith.constant 128 : i32
    %16 = vector.broadcast %c128_i32 : i32 to vector<128x128xi32>
    %17 = arith.select %15, %13, %16 : vector<128x128xi1>, vector<128x128xi32>
    %cst_8 = arith.constant dense<2147483647> : vector<128xi32>
    %18 = vector.multi_reduction <minsi>, %17, %cst_8 [1] : vector<128x128xi32> to vector<128xi32>
    %19 = vector.shape_cast %18 : vector<128xi32> to vector<128x1xi32>
    %20 = vector.broadcast %19 : vector<128x1xi32> to vector<128x128xi32>
    %21 = arith.cmpi eq, %13, %20 : vector<128x128xi32>
    %22 = arith.extui %21 : vector<128x128xi1> to vector<128x128xi32>
    %23 = arith.sitofp %22 : vector<128x128xi32> to vector<128x128xf32>
    %c0_9 = arith.constant 0 : index
    %c0_10 = arith.constant 0 : index
    %24 = vector.load %arg6[%c0_9, %c0_10] : memref<128x128xf32, #tpu.memory_space<vmem>>, vector<128x128xf32>
    %cst_11 = arith.constant dense<0.000000e+00> : vector<128x128xf32>
    %25 = tpu.matmul %23, %24, %cst_11 {dimension_numbers = #tpu.dot_dimension_numbers<[1], [0], [0], [1], [0, 0, 1, 1], [], []>} : vector<128x128xf32>, vector<128x128xf32>, vector<128x128xf32> -> vector<128x128xf32>
    %26 = tpu.iota {dimensions = array<i32: 0>} : vector<128x1xi32>
    %c256_i32 = arith.constant 256 : i32
    %27 = arith.muli %arg0, %c256_i32 : i32
    %c128_i32_12 = arith.constant 128 : i32
    %28 = arith.muli %arg1, %c128_i32_12 : i32
    %29 = arith.addi %27, %28 : i32
    %30 = vector.broadcast %29 : i32 to vector<128x1xi32>
    %31 = arith.addi %26, %30 : vector<128x1xi32>
    %c300_i32 = arith.constant 300 : i32
    %32 = vector.broadcast %c300_i32 : i32 to vector<128x1xi32>
    %33 = arith.cmpi slt, %31, %32 : vector<128x1xi32>
    %34 = arith.extui %33 : vector<128x1xi1> to vector<128x1xi32>
    %35 = arith.sitofp %34 : vector<128x1xi32> to vector<128x1xf32>
    %36 = arith.subf %25, %3 : vector<128x128xf32>
    %37 = arith.mulf %36, %36 : vector<128x128xf32>
    %cst_13 = arith.constant dense<0.000000e+00> : vector<128xf32>
    %38 = vector.multi_reduction <add>, %37, %cst_13 [1] : vector<128x128xf32> to vector<128xf32>
    %39 = vector.shape_cast %38 : vector<128xf32> to vector<128x1xf32>
    %c0_14 = arith.constant 0 : index
    %c0_15 = arith.constant 0 : index
    %c0_16 = arith.constant 0 : index
    %40 = vector.load %arg11[%c0_14, %c0_15, %c0_16] : memref<1x1x1xf32, #tpu.memory_space<vmem>>, vector<1x1x1xf32>
    %41 = vector.shape_cast %40 : vector<1x1x1xf32> to vector<1x1xf32>
    %42 = arith.mulf %39, %35 : vector<128x1xf32>
    %cst_17 = arith.constant dense<0.000000e+00> : vector<1xf32>
    %43 = vector.multi_reduction <add>, %42, %cst_17 [0] : vector<128x1xf32> to vector<1xf32>
    %44 = vector.shape_cast %43 : vector<1xf32> to vector<1x1xf32>
    %45 = arith.addf %41, %44 : vector<1x1xf32>
    %c0_18 = arith.constant 0 : index
    %c0_19 = arith.constant 0 : index
    %c0_20 = arith.constant 0 : index
    %46 = vector.load %arg11[%c0_18, %c0_19, %c0_20] : memref<1x1x1xf32, #tpu.memory_space<vmem>>, vector<1x1x1xf32>
    %47 = vector.shape_cast %46 : vector<1x1x1xf32> to vector<1x1xf32>
    %48 = vector.shape_cast %45 : vector<1x1xf32> to vector<1x1x1xf32>
    tpu.vector_store %arg11[%c0_18, %c0_19, %c0_20], %48 {strides = array<i32>} : memref<1x1x1xf32, #tpu.memory_space<vmem>>, vector<1x1x1xf32>,
    %c0_21 = arith.constant 0 : index
    %c0_22 = arith.constant 0 : index
    %49 = vector.load %arg3[%c0_21, %c0_22] : memref<128x128xf32, #tpu.memory_space<vmem>>, vector<128x128xf32>
    %50 = arith.addf %3, %25 : vector<128x128xf32>
    %51 = vector.broadcast %35 : vector<128x1xf32> to vector<128x128xf32>
    %52 = arith.mulf %50, %51 : vector<128x128xf32>
    %53 = arith.mulf %52, %49 : vector<128x128xf32>
    %c0_23 = arith.constant 0 : index
    %c0_24 = arith.constant 0 : index
    %54 = vector.load %arg4[%c0_23, %c0_24] : memref<1x128xi32, #tpu.memory_space<vmem>>, vector<1x128xi32>
    %55 = tpu.iota {dimensions = array<i32: 0>} : vector<2x128xi32>
    %56 = vector.broadcast %54 : vector<1x128xi32> to vector<2x128xi32>
    %57 = arith.cmpi eq, %55, %56 : vector<2x128xi32>
    %58 = arith.extui %57 : vector<2x128xi1> to vector<2x128xi32>
    %59 = arith.sitofp %58 : vector<2x128xi32> to vector<2x128xf32>
    %c0_25 = arith.constant 0 : index
    %c0_26 = arith.constant 0 : index
    %c0_27 = arith.constant 0 : index
    %60 = vector.load %arg8[%c0_25, %c0_26, %c0_27] : memref<1x2x128xf32, #tpu.memory_space<vmem>>, vector<1x2x128xf32>
    %61 = vector.shape_cast %60 : vector<1x2x128xf32> to vector<2x128xf32>
    %cst_28 = arith.constant dense<0.000000e+00> : vector<2x128xf32>
    %62 = tpu.matmul %59, %53, %cst_28 {dimension_numbers = #tpu.dot_dimension_numbers<[1], [0], [0], [1], [0, 0, 1, 1], [], []>} : vector<2x128xf32>, vector<128x128xf32>, vector<2x128xf32> -> vector<2x128xf32>
    %63 = arith.addf %61, %62 : vector<2x128xf32>
    %c0_29 = arith.constant 0 : index
    %c0_30 = arith.constant 0 : index
    %c0_31 = arith.constant 0 : index
    %64 = vector.load %arg8[%c0_29, %c0_30, %c0_31] : memref<1x2x128xf32, #tpu.memory_space<vmem>>, vector<1x2x128xf32>
    %65 = vector.shape_cast %64 : vector<1x2x128xf32> to vector<2x128xf32>
    %66 = vector.shape_cast %63 : vector<2x128xf32> to vector<1x2x128xf32>
    tpu.vector_store %arg8[%c0_29, %c0_30, %c0_31], %66 {strides = array<i32>} : memref<1x2x128xf32, #tpu.memory_space<vmem>>, vector<1x2x128xf32>,
    %c0_32 = arith.constant 0 : index
    %c0_33 = arith.constant 0 : index
    %c0_34 = arith.constant 0 : index
    %67 = vector.load %arg9[%c0_32, %c0_33, %c0_34] : memref<1x2x128xf32, #tpu.memory_space<vmem>>, vector<1x2x128xf32>
    %68 = vector.shape_cast %67 : vector<1x2x128xf32> to vector<2x128xf32>
    %cst_35 = arith.constant dense<0.000000e+00> : vector<2x128xf32>
    %69 = tpu.matmul %59, %52, %cst_35 {dimension_numbers = #tpu.dot_dimension_numbers<[1], [0], [0], [1], [0, 0, 1, 1], [], []>} : vector<2x128xf32>, vector<128x128xf32>, vector<2x128xf32> -> vector<2x128xf32>
    %70 = arith.addf %68, %69 : vector<2x128xf32>
    %c0_36 = arith.constant 0 : index
    %c0_37 = arith.constant 0 : index
    %c0_38 = arith.constant 0 : index
    %71 = vector.load %arg9[%c0_36, %c0_37, %c0_38] : memref<1x2x128xf32, #tpu.memory_space<vmem>>, vector<1x2x128xf32>
    %72 = vector.shape_cast %71 : vector<1x2x128xf32> to vector<2x128xf32>
    %73 = vector.shape_cast %70 : vector<2x128xf32> to vector<1x2x128xf32>
    tpu.vector_store %arg9[%c0_36, %c0_37, %c0_38], %73 {strides = array<i32>} : memref<1x2x128xf32, #tpu.memory_space<vmem>>, vector<1x2x128xf32>,
    %c0_39 = arith.constant 0 : index
    %c0_40 = arith.constant 0 : index
    %c0_41 = arith.constant 0 : index
    %74 = vector.load %arg10[%c0_39, %c0_40, %c0_41] : memref<1x2x1xf32, #tpu.memory_space<vmem>>, vector<1x2x1xf32>
    %75 = vector.shape_cast %74 : vector<1x2x1xf32> to vector<2x1xf32>
    %cst_42 = arith.constant dense<0.000000e+00> : vector<2xf32>
    %76 = vector.multi_reduction <add>, %59, %cst_42 [1] : vector<2x128xf32> to vector<2xf32>
    %77 = vector.shape_cast %76 : vector<2xf32> to vector<2x1xf32>
    %78 = arith.addf %75, %77 : vector<2x1xf32>
    %c0_43 = arith.constant 0 : index
    %c0_44 = arith.constant 0 : index
    %c0_45 = arith.constant 0 : index
    %79 = vector.load %arg10[%c0_43, %c0_44, %c0_45] : memref<1x2x1xf32, #tpu.memory_space<vmem>>, vector<1x2x1xf32>
    %80 = vector.shape_cast %79 : vector<1x2x1xf32> to vector<2x1xf32>
    %81 = vector.shape_cast %78 : vector<2x1xf32> to vector<1x2x1xf32>
    tpu.vector_store %arg10[%c0_43, %c0_44, %c0_45], %81 {strides = array<i32>} : memref<1x2x1xf32, #tpu.memory_space<vmem>>, vector<1x2x1xf32>,
    return
  }
  func.func @transform_0(%arg0: i32, %arg1: i32) -> (i32, i32) {
    %c2_i32 = arith.constant 2 : i32
    %0 = arith.muli %arg0, %c2_i32 : i32
    %1 = arith.addi %0, %arg1 : i32
    %c0_i32 = arith.constant 0 : i32
    %c0_i32_0 = arith.constant 0 : i32
    return %1, %c0_i32 : i32, i32
  }
  func.func @transform_1(%arg0: i32, %arg1: i32) -> (i32, i32) {
    %c2_i32 = arith.constant 2 : i32
    %0 = arith.muli %arg0, %c2_i32 : i32
    %1 = arith.addi %0, %arg1 : i32
    %c0_i32 = arith.constant 0 : i32
    %c0_i32_0 = arith.constant 0 : i32
    return %1, %c0_i32 : i32, i32
  }
  func.func @transform_2(%arg0: i32, %arg1: i32) -> (i32, i32) {
    %c2_i32 = arith.constant 2 : i32
    %0 = arith.muli %arg0, %c2_i32 : i32
    %1 = arith.addi %0, %arg1 : i32
    %c0_i32 = arith.constant 0 : i32
    %c0_i32_0 = arith.constant 0 : i32
    return %c0_i32, %1 : i32, i32
  }
  func.func @transform_3(%arg0: i32, %arg1: i32) -> (i32, i32) {
    %c0_i32 = arith.constant 0 : i32
    %c0_i32_0 = arith.constant 0 : i32
    %c0_i32_1 = arith.constant 0 : i32
    return %c0_i32, %c0_i32_0 : i32, i32
  }
  func.func @transform_4(%arg0: i32, %arg1: i32) -> (i32, i32) {
    %c0_i32 = arith.constant 0 : i32
    %c0_i32_0 = arith.constant 0 : i32
    %c0_i32_1 = arith.constant 0 : i32
    return %c0_i32, %c0_i32_0 : i32, i32
  }
  func.func @transform_5(%arg0: i32, %arg1: i32) -> (i32, i32) {
    %c0_i32 = arith.constant 0 : i32
    %c0_i32_0 = arith.constant 0 : i32
    %c0_i32_1 = arith.constant 0 : i32
    return %c0_i32, %c0_i32_0 : i32, i32
  }
  func.func @transform_6(%arg0: i32, %arg1: i32) -> (i32, i32, i32) {
    %c0_i32 = arith.constant 0 : i32
    %c0_i32_0 = arith.constant 0 : i32
    %c0_i32_1 = arith.constant 0 : i32
    return %arg0, %c0_i32, %c0_i32_0 : i32, i32, i32
  }
  func.func @transform_7(%arg0: i32, %arg1: i32) -> (i32, i32, i32) {
    %c0_i32 = arith.constant 0 : i32
    %c0_i32_0 = arith.constant 0 : i32
    %c0_i32_1 = arith.constant 0 : i32
    return %arg0, %c0_i32, %c0_i32_0 : i32, i32, i32
  }
  func.func @transform_8(%arg0: i32, %arg1: i32) -> (i32, i32, i32) {
    %c0_i32 = arith.constant 0 : i32
    %c0_i32_0 = arith.constant 0 : i32
    %c0_i32_1 = arith.constant 0 : i32
    return %arg0, %c0_i32, %c0_i32_0 : i32, i32, i32
  }
  func.func @transform_9(%arg0: i32, %arg1: i32) -> (i32, i32, i32) {
    %c0_i32 = arith.constant 0 : i32
    %c0_i32_0 = arith.constant 0 : i32
    %c0_i32_1 = arith.constant 0 : i32
    return %arg0, %c0_i32, %c0_i32_0 : i32, i32, i32
  }
}

</mosaic_0001>

<llo_original>
// kernel: tpu_custom_call.1
$region0: #{tpu_custom_call.1}
  #allocation0 [shape = 'u32[]', space=smem, size = 0x4, offset = 0x4, fixed_abs, tag = 'smem constant byte address 0x4 - core index']
  #allocation1 [shape = 'u32[144,128]{1,0:T(1,128)}', space=vmem, size = 0x12000, scoped, tag = 'internal scratch']
  %s0 = inlined_call_operand.hbm [shape: f32[512,128], index: 0, kind: input, shape index: {}]
  %s1 = inlined_call_operand.hbm [shape: f32[512,128], index: 1, kind: input, shape index: {}]
  %s2 = inlined_call_operand.vmem [shape: s32[1,512], index: 2, kind: input, shape index: {}]
  %s3 = inlined_call_operand.hbm [shape: f32[128,128], index: 3, kind: input, shape index: {}]
  %s4 = inlined_call_operand.hbm [shape: f32[128,128], index: 4, kind: input, shape index: {}]
  %s5 = inlined_call_operand.vmem [shape: f32[1,128], index: 5, kind: input, shape index: {}]
  %s6 = inlined_call_operand.hbm [shape: f32[2,2,128], index: 6, kind: output, shape index: {0}]
  %s7 = inlined_call_operand.hbm [shape: f32[2,2,128], index: 7, kind: output, shape index: {1}]
  %s8 = inlined_call_operand.vmem [shape: f32[2,2,1], index: 8, kind: output, shape index: {2}]
  %s9 = inlined_call_operand.vmem [shape: f32[2,1,1], index: 9, kind: output, shape index: {3}]
  %10 = xla_tuple %s6, %s7, %s8, %s9
  %s11 = sld [smem:[#allocation0]]
  $region101: #{tpu_custom_call.1} parent=0
    _
  %s13 = ssub.s32 1, %s11
  %s14 = scalar_select 0, %s13, %s11
  $region1: #{tpu_custom_call.1} parent=0
    #allocation2 [shape = 'u8[131072]{0}', space=vmem, size = 0x20000, scoped, tag = 'input window, operand 0']
    #allocation3 [shape = 's32[2]{0}', space=sflag, size = 0x8, scoped, tag = 'scoped memory for tpu_custom_call.1']
    #allocation4 [shape = 's32[2]{0}', space=sflag, size = 0x8, scoped, tag = 'scoped memory for tpu_custom_call.1']
    #allocation5 [shape = 'u8[131072]{0}', space=vmem, size = 0x20000, scoped, tag = 'input window, operand 1']
    #allocation6 [shape = 's32[2]{0}', space=sflag, size = 0x8, scoped, tag = 'scoped memory for tpu_custom_call.1']
    #allocation7 [shape = 'u8[65536]{0}', space=vmem, size = 0x10000, scoped, tag = 'input window, operand 3, single buffered']
    #allocation8 [shape = 'u8[65536]{0}', space=vmem, size = 0x10000, scoped, tag = 'input window, operand 4, single buffered']
    #allocation9 [shape = 's32[1]{0}', space=sflag, size = 0x4, scoped, tag = 'scoped memory for tpu_custom_call.1']
    #allocation10 [shape = 'u8[2048]{0}', space=vmem, size = 0x800, scoped, tag = 'output window, operand 0']
    #allocation11 [shape = 'u8[2048]{0}', space=vmem, size = 0x800, scoped, tag = 'output window, operand 1']
    #allocation12 [shape = 's32[2]{0}', space=sflag, size = 0x8, scoped, tag = 'scoped memory for tpu_custom_call.1']
    %15 = vsyncpa [#allocation3], 0
    %s16 = scalar_lea.sflag [#allocation3], 1
    %17 = vsyncpa %s16, 0
    %18 = vsyncpa [#allocation6], 0
    %s19 = scalar_lea.sflag [#allocation6], 1
    %20 = vsyncpa %s19, 0
    %21 = vsyncpa [#allocation9], 0
    %22 = vsyncpa [#allocation4], 0
    %s23 = scalar_lea.sflag [#allocation4], 1
    %24 = vsyncpa %s23, 0
    %25 = vsyncpa [#allocation12], 0
    %s26 = scalar_lea.sflag [#allocation12], 1
    %27 = vsyncpa %s26, 0
    loop: start=0, step=1, limit=6
    $region2: #{tpu_custom_call.1} parent=1 // loop_pre_header
      _
    $region3: #{tpu_custom_call.1} parent=1 // loop_header
      %s29 = sphi 0, %s33
      %p30 = scmp.ge.s32.totalorder %s29, 6
      %s36 = sphi 0, %s48
      %s37 = sphi 0, %s44
      %s38 = sphi 0, %s36
      %s39 = sphi 0, %s37
      %s40 = sphi 0, %s38
      %s41 = sphi 0, %s39
      %s55 = sphi 0, %s57
      %s58 = sphi 0, %s55
      %s59 = sphi 0, %s58
      %s75 = sphi 0, %s59
      %s85 = sphi 0, %s87
      %s88 = sphi 0, %s85
      %s89 = sphi 0, %s88
      %s105 = sphi 0, %s89
      %s115 = sphi 0, %s117
      %s118 = sphi 0, %s115
      %s119 = sphi 0, %s118
      %s135 = sphi 0, %s119
      %s139 = sphi 0, %s139
      %s141 = sphi 0, %s139
      %s142 = sphi 0, %s141
      %s156 = sphi 0, %s142
      %s160 = sphi 0, %s160
      %s162 = sphi 0, %s160
      %s163 = sphi 0, %s162
      %s177 = sphi 0, %s163
      %s181 = sphi 0, %s181
      %s183 = sphi 0, %s181
      %s184 = sphi 0, %s183
      %s198 = sphi 0, %s184
      %s204 = sphi 0, %s206
      %s207 = sphi 0, %s204
      %s208 = sphi 0, %s207
      %s224 = sphi 0, %s208
      %s230 = sphi 0, %s232
      %s233 = sphi 0, %s230
      %s234 = sphi 0, %s233
      %s250 = sphi 0, %s234
      %s256 = sphi 0, %s258
      %s259 = sphi 0, %s256
      %s260 = sphi 0, %s259
      %s276 = sphi 0, %s260
      %s282 = sphi 0, %s284
      %s285 = sphi 0, %s282
      %s286 = sphi 0, %s285
      %s302 = sphi 0, %s286
    $region4: #{tpu_custom_call.1} parent=1 // loop_header_branch
      %32 = sbr.rel (%p30) target = $region8
    $region5: #{tpu_custom_call.1} parent=1 // loop_body
      %s34 = ssub.s32 %s29, 1
      %s35 = ssub.s32 %s29, 2
      %s42 = sadd.s32 1, %s37
      %p43 = scmp.ge.s32.totalorder %s42, 2
      %s44 = scalar_select %p43, 0, %s42
      %s45 = sadd.s32 1, %s36
      %s46 = scalar_select %p43, %s45, %s36
      %p47 = scmp.ge.s32.totalorder %s46, 2
      %s48 = scalar_select %p47, 0, %s46
      %s49 = smul.u32 %s36, 2
      %s50 = sadd.s32 %s49, %s37
      %s51 = smul.u32 %s48, 2
      %s52 = sadd.s32 %s51, %s44
      %s53 = ssub.s32 %s50, %s52
      %p54 = scmp.eq.s32.totalorder %s53, 0
      %s56 = sadd.s32 %s55, 1
      %s57 = scalar_select %p54, %s55, %s56
      %p60 = pneg %p54
      %p61 = scmp.eq.s32.totalorder %s29, 3
      %p62 = por %p60, %p61
      %p63 = scmp.ne.s32.totalorder %s55, %s58
      %p64 = scmp.eq.s32.totalorder %s29, 0
      %p65 = por %p63, %p64
      %p66 = scmp.ne.s32.totalorder %s55, %s58
      %p67 = scmp.eq.s32.totalorder %s34, 3
      %p68 = por %p66, %p67
      %p69 = scmp.ne.s32.totalorder %s58, %s59
      %p70 = scmp.eq.s32.totalorder %s34, 0
      %p71 = por %p69, %p70
      %p72 = scmp.ne.s32.totalorder %s58, %s59
      %p73 = scmp.eq.s32.totalorder %s35, 3
      %p74 = por %p72, %p73
      %p76 = scmp.ne.s32.totalorder %s59, %s75
      %p77 = scmp.eq.s32.totalorder %s35, 0
      %p78 = por %p76, %p77
      %s79 = smul.u32 %s36, 2
      %s80 = sadd.s32 %s79, %s37
      %s81 = smul.u32 %s48, 2
      %s82 = sadd.s32 %s81, %s44
      %s83 = ssub.s32 %s80, %s82
      %p84 = scmp.eq.s32.totalorder %s83, 0
      %s86 = sadd.s32 %s85, 1
      %s87 = scalar_select %p84, %s85, %s86
      %p90 = pneg %p84
      %p91 = scmp.eq.s32.totalorder %s29, 3
      %p92 = por %p90, %p91
      %p93 = scmp.ne.s32.totalorder %s85, %s88
      %p94 = scmp.eq.s32.totalorder %s29, 0
      %p95 = por %p93, %p94
      %p96 = scmp.ne.s32.totalorder %s85, %s88
      %p97 = scmp.eq.s32.totalorder %s34, 3
      %p98 = por %p96, %p97
      %p99 = scmp.ne.s32.totalorder %s88, %s89
      %p100 = scmp.eq.s32.totalorder %s34, 0
      %p101 = por %p99, %p100
      %p102 = scmp.ne.s32.totalorder %s88, %s89
      %p103 = scmp.eq.s32.totalorder %s35, 3
      %p104 = por %p102, %p103
      %p106 = scmp.ne.s32.totalorder %s89, %s105
      %p107 = scmp.eq.s32.totalorder %s35, 0
      %p108 = por %p106, %p107
      %s109 = smul.u32 %s36, 2
      %s110 = sadd.s32 %s109, %s37
      %s111 = smul.u32 %s48, 2
      %s112 = sadd.s32 %s111, %s44
      %s113 = ssub.s32 %s110, %s112
      %p114 = scmp.eq.s32.totalorder %s113, 0
      %s116 = sadd.s32 %s115, 1
      %s117 = scalar_select %p114, %s115, %s116
      %p120 = pneg %p114
      %p121 = scmp.eq.s32.totalorder %s29, 3
      %p122 = por %p120, %p121
      %p123 = scmp.ne.s32.totalorder %s115, %s118
      %p124 = scmp.eq.s32.totalorder %s29, 0
      %p125 = por %p123, %p124
      %p126 = scmp.ne.s32.totalorder %s115, %s118
      %p127 = scmp.eq.s32.totalorder %s34, 3
      %p128 = por %p126, %p127
      %p129 = scmp.ne.s32.totalorder %s118, %s119
      %p130 = scmp.eq.s32.totalorder %s34, 0
      %p131 = por %p129, %p130
      %p132 = scmp.ne.s32.totalorder %s118, %s119
      %p133 = scmp.eq.s32.totalorder %s35, 3
      %p134 = por %p132, %p133
      %p136 = scmp.ne.s32.totalorder %s119, %s135
      %p137 = scmp.eq.s32.totalorder %s35, 0
      %p138 = por %p136, %p137
      %s140 = sadd.s32 %s139, 1
      %p143 = scmp.eq.s32.totalorder %s29, 3
      %p144 = scmp.ne.s32.totalorder %s139, %s141
      %p145 = scmp.eq.s32.totalorder %s29, 0
      %p146 = por %p144, %p145
      %p147 = scmp.ne.s32.totalorder %s139, %s141
      %p148 = scmp.eq.s32.totalorder %s34, 3
      %p149 = por %p147, %p148
      %p150 = scmp.ne.s32.totalorder %s141, %s142
      %p151 = scmp.eq.s32.totalorder %s34, 0
      %p152 = por %p150, %p151
      %p153 = scmp.ne.s32.totalorder %s141, %s142
      %p154 = scmp.eq.s32.totalorder %s35, 3
      %p155 = por %p153, %p154
      %p157 = scmp.ne.s32.totalorder %s142, %s156
      %p158 = scmp.eq.s32.totalorder %s35, 0
      %p159 = por %p157, %p158
      %s161 = sadd.s32 %s160, 1
      %p164 = scmp.eq.s32.totalorder %s29, 3
      %p165 = scmp.ne.s32.totalorder %s160, %s162
      %p166 = scmp.eq.s32.totalorder %s29, 0
      %p167 = por %p165, %p166
      %p168 = scmp.ne.s32.totalorder %s160, %s162
      %p169 = scmp.eq.s32.totalorder %s34, 3
      %p170 = por %p168, %p169
      %p171 = scmp.ne.s32.totalorder %s162, %s163
      %p172 = scmp.eq.s32.totalorder %s34, 0
      %p173 = por %p171, %p172
      %p174 = scmp.ne.s32.totalorder %s162, %s163
      %p175 = scmp.eq.s32.totalorder %s35, 3
      %p176 = por %p174, %p175
      %p178 = scmp.ne.s32.totalorder %s163, %s177
      %p179 = scmp.eq.s32.totalorder %s35, 0
      %p180 = por %p178, %p179
      %s182 = sadd.s32 %s181, 1
      %p185 = scmp.eq.s32.totalorder %s29, 3
      %p186 = scmp.ne.s32.totalorder %s181, %s183
      %p187 = scmp.eq.s32.totalorder %s29, 0
      %p188 = por %p186, %p187
      %p189 = scmp.ne.s32.totalorder %s181, %s183
      %p190 = scmp.eq.s32.totalorder %s34, 3
      %p191 = por %p189, %p190
      %p192 = scmp.ne.s32.totalorder %s183, %s184
      %p193 = scmp.eq.s32.totalorder %s34, 0
      %p194 = por %p192, %p193
      %p195 = scmp.ne.s32.totalorder %s183, %s184
      %p196 = scmp.eq.s32.totalorder %s35, 3
      %p197 = por %p195, %p196
      %p199 = scmp.ne.s32.totalorder %s184, %s198
      %p200 = scmp.eq.s32.totalorder %s35, 0
      %p201 = por %p199, %p200
      %s202 = ssub.s32 %s36, %s48
      %p203 = scmp.eq.s32.totalorder %s202, 0
      %s205 = sadd.s32 %s204, 1
      %s206 = scalar_select %p203, %s204, %s205
      %p209 = pneg %p203
      %p210 = scmp.eq.s32.totalorder %s29, 3
      %p211 = por %p209, %p210
      %p212 = scmp.ne.s32.totalorder %s204, %s207
      %p213 = scmp.eq.s32.totalorder %s29, 0
      %p214 = por %p212, %p213
      %p215 = scmp.ne.s32.totalorder %s204, %s207
      %p216 = scmp.eq.s32.totalorder %s34, 3
      %p217 = por %p215, %p216
      %p218 = scmp.ne.s32.totalorder %s207, %s208
      %p219 = scmp.eq.s32.totalorder %s34, 0
      %p220 = por %p218, %p219
      %p221 = scmp.ne.s32.totalorder %s207, %s208
      %p222 = scmp.eq.s32.totalorder %s35, 3
      %p223 = por %p221, %p222
      %p225 = scmp.ne.s32.totalorder %s208, %s224
      %p226 = scmp.eq.s32.totalorder %s35, 0
      %p227 = por %p225, %p226
      %s228 = ssub.s32 %s36, %s48
      %p229 = scmp.eq.s32.totalorder %s228, 0
      %s231 = sadd.s32 %s230, 1
      %s232 = scalar_select %p229, %s230, %s231
      %p235 = pneg %p229
      %p236 = scmp.eq.s32.totalorder %s29, 3
      %p237 = por %p235, %p236
      %p238 = scmp.ne.s32.totalorder %s230, %s233
      %p239 = scmp.eq.s32.totalorder %s29, 0
      %p240 = por %p238, %p239
      %p241 = scmp.ne.s32.totalorder %s230, %s233
      %p242 = scmp.eq.s32.totalorder %s34, 3
      %p243 = por %p241, %p242
      %p244 = scmp.ne.s32.totalorder %s233, %s234
      %p245 = scmp.eq.s32.totalorder %s34, 0
      %p246 = por %p244, %p245
      %p247 = scmp.ne.s32.totalorder %s233, %s234
      %p248 = scmp.eq.s32.totalorder %s35, 3
      %p249 = por %p247, %p248
      %p251 = scmp.ne.s32.totalorder %s234, %s250
      %p252 = scmp.eq.s32.totalorder %s35, 0
      %p253 = por %p251, %p252
      %s254 = ssub.s32 %s36, %s48
      %p255 = scmp.eq.s32.totalorder %s254, 0
      %s257 = sadd.s32 %s256, 1
      %s258 = scalar_select %p255, %s256, %s257
      %p261 = pneg %p255
      %p262 = scmp.eq.s32.totalorder %s29, 3
      %p263 = por %p261, %p262
      %p264 = scmp.ne.s32.totalorder %s256, %s259
      %p265 = scmp.eq.s32.totalorder %s29, 0
      %p266 = por %p264, %p265
      %p267 = scmp.ne.s32.totalorder %s256, %s259
      %p268 = scmp.eq.s32.totalorder %s34, 3
      %p269 = por %p267, %p268
      %p270 = scmp.ne.s32.totalorder %s259, %s260
      %p271 = scmp.eq.s32.totalorder %s34, 0
      %p272 = por %p270, %p271
      %p273 = scmp.ne.s32.totalorder %s259, %s260
      %p274 = scmp.eq.s32.totalorder %s35, 3
      %p275 = por %p273, %p274
      %p277 = scmp.ne.s32.totalorder %s260, %s276
      %p278 = scmp.eq.s32.totalorder %s35, 0
      %p279 = por %p277, %p278
      %s280 = ssub.s32 %s36, %s48
      %p281 = scmp.eq.s32.totalorder %s280, 0
      %s283 = sadd.s32 %s282, 1
      %s284 = scalar_select %p281, %s282, %s283
      %p287 = pneg %p281
      %p288 = scmp.eq.s32.totalorder %s29, 3
      %p289 = por %p287, %p288
      %p290 = scmp.ne.s32.totalorder %s282, %s285
      %p291 = scmp.eq.s32.totalorder %s29, 0
      %p292 = por %p290, %p291
      %p293 = scmp.ne.s32.totalorder %s282, %s285
      %p294 = scmp.eq.s32.totalorder %s34, 3
      %p295 = por %p293, %p294
      %p296 = scmp.ne.s32.totalorder %s285, %s286
      %p297 = scmp.eq.s32.totalorder %s34, 0
      %p298 = por %p296, %p297
      %p299 = scmp.ne.s32.totalorder %s285, %s286
      %p300 = scmp.eq.s32.totalorder %s35, 3
      %p301 = por %p299, %p300
      %p303 = scmp.ne.s32.totalorder %s286, %s302
      %p304 = scmp.eq.s32.totalorder %s35, 0
      %p305 = por %p303, %p304
      %p306 = scmp.le.s32.totalorder 1, %s29
      %p307 = scmp.lt.s32.totalorder %s29, 5
      %p308 = pnand %p306, %p307
      %p309 = pneg %p308
      // Predicated region
      $region9: #{tpu_custom_call.1} parent=5 // pred_check
        _
      $region10: #{tpu_custom_call.1} parent=5 // pred_check_branch
        %311 = sbr.rel (%p308) target = $region12
      $region11: #{tpu_custom_call.1} parent=5 // pred_region
        %s312 = ssub.s32 %s29, 1
        // Predicated region
        $region13: #{tpu_custom_call.1} parent=11 // pred_check
          %p313 = pneg %p152
        $region14: #{tpu_custom_call.1} parent=11 // pred_check_branch
          %315 = sbr.rel (%p313) target = $region16
        $region15: #{tpu_custom_call.1} parent=11 // pred_region
          %s317 = ssub.s32 2048, 2048
          %318 = vsyncadd [#allocation6], %s317
          %s319 = sshll.u32 [#allocation7], 4
          %s320 = int_to_ptr.vmem [resolvable:$true] %s319
          %325 = dma.hbm_to_vmem [thread:$0]  %s3, 2048, %s320, [#allocation6], 128, 128, 8
        $region16: #{tpu_custom_call.1} parent=11 // pred_fallthru
          _
        // Predicated region
        $region17: #{tpu_custom_call.1} parent=11 // pred_check
          %p326 = pneg %p173
        $region18: #{tpu_custom_call.1} parent=11 // pred_check_branch
          %328 = sbr.rel (%p326) target = $region20
        $region19: #{tpu_custom_call.1} parent=11 // pred_region
          %s330 = ssub.s32 2048, 2048
          %331 = vsyncadd [#allocation9], %s330
          %s332 = sshll.u32 [#allocation8], 4
          %s333 = int_to_ptr.vmem [resolvable:$true] %s332
          %338 = dma.hbm_to_vmem [thread:$0]  %s4, 2048, %s333, [#allocation9], 128, 128, 8
        $region20: #{tpu_custom_call.1} parent=11 // pred_fallthru
          _
        // Predicated region
        $region21: #{tpu_custom_call.1} parent=11 // pred_check
          %p339 = pneg %p194
        $region22: #{tpu_custom_call.1} parent=11 // pred_check_branch
          %341 = sbr.rel (%p339) target = $region24
        $region23: #{tpu_custom_call.1} parent=11 // pred_region
          _
        $region24: #{tpu_custom_call.1} parent=11 // pred_fallthru
          _
      $region12: #{tpu_custom_call.1} parent=5 // pred_fallthru
        _
      %p342 = scmp.lt.s32.totalorder %s29, 4
      // Predicated region
      $region25: #{tpu_custom_call.1} parent=5 // pred_check
        %p343 = pneg %p342
      $region26: #{tpu_custom_call.1} parent=5 // pred_check_branch
        %345 = sbr.rel (%p343) target = $region28
      $region27: #{tpu_custom_call.1} parent=5 // pred_region
        // Predicated region
        $region29: #{tpu_custom_call.1} parent=27 // pred_check
          %p346 = pneg %p65
        $region30: #{tpu_custom_call.1} parent=27 // pred_check_branch
          %348 = sbr.rel (%p346) target = $region32
        $region31: #{tpu_custom_call.1} parent=27 // pred_region
          %s349 = sand.u32 %s55, 1
          %s350 = scalar_lea.sflag [#allocation3], %s349
          %s351 = sand.u32 %s55, 1
          %s352 = smul.addr %s351, 128
          %s353 = scalar_lea.vmem [#allocation2], %s352
          %s354 = smul.u32 %s36, 2
          %s355 = sadd.s32 %s354, %s37
          %s356 = smul.u32 16, %s355
          %s358 = ssub.s32 2048, 2048
          %359 = vsyncadd %s350, %s358
          %s360 = smul.addr %s356, 128
          %s361 = scalar_lea.hbm %s0, %s360
          %s362 = sshll.u32 %s353, 4
          %s363 = int_to_ptr.vmem [resolvable:$true] %s362
          %368 = dma.hbm_to_vmem [thread:$0]  %s361, 2048, %s363, %s350, 128, 128, 8
        $region32: #{tpu_custom_call.1} parent=27 // pred_fallthru
          _
        // Predicated region
        $region33: #{tpu_custom_call.1} parent=27 // pred_check
          %p369 = pneg %p95
        $region34: #{tpu_custom_call.1} parent=27 // pred_check_branch
          %371 = sbr.rel (%p369) target = $region36
        $region35: #{tpu_custom_call.1} parent=27 // pred_region
          %s372 = sand.u32 %s29, 1
          %s373 = scalar_lea.sflag [#allocation6], %s372
          %s374 = sand.u32 %s85, 1
          %s375 = smul.addr %s374, 128
          %s376 = scalar_lea.vmem [#allocation5], %s375
          %s377 = smul.u32 %s36, 2
          %s378 = sadd.s32 %s377, %s37
          %s379 = smul.u32 16, %s378
          %s381 = ssub.s32 2048, 2048
          %382 = vsyncadd %s373, %s381
          %s383 = smul.addr %s379, 128
          %s384 = scalar_lea.hbm %s1, %s383
          %s385 = sshll.u32 %s376, 4
          %s386 = int_to_ptr.vmem [resolvable:$true] %s385
          %391 = dma.hbm_to_vmem [thread:$0]  %s384, 2048, %s386, %s373, 128, 128, 8
        $region36: #{tpu_custom_call.1} parent=27 // pred_fallthru
          _
        // Predicated region
        $region37: #{tpu_custom_call.1} parent=27 // pred_check
          %p392 = pneg %p125
        $region38: #{tpu_custom_call.1} parent=27 // pred_check_branch
          %394 = sbr.rel (%p392) target = $region40
        $region39: #{tpu_custom_call.1} parent=27 // pred_region
          %s395 = smul.u32 %s36, 2
          %s396 = sadd.s32 %s395, %s37
          %p397 = scmp.lt.s32.totalorder %s396, 3
          %s398 = scalar_select %p397, %s396, 3
          %s399 = scalar_lea.vmem %s2, %s398
          %s400 = smul.u32 %s36, 2
          %s401 = sadd.s32 %s400, %s37
        $region40: #{tpu_custom_call.1} parent=27 // pred_fallthru
          _
      $region28: #{tpu_custom_call.1} parent=5 // pred_fallthru
        _
      %p402 = scmp.le.s32.totalorder 1, %s29
      %p403 = scmp.lt.s32.totalorder %s29, 5
      %p404 = pnand %p402, %p403
      %p405 = pneg %p404
      // Predicated region
      $region41: #{tpu_custom_call.1} parent=5 // pred_check
        _
      $region42: #{tpu_custom_call.1} parent=5 // pred_check_branch
        %407 = sbr.rel (%p404) target = $region44
      $region43: #{tpu_custom_call.1} parent=5 // pred_region
        %s408 = ssub.s32 %s29, 1
        %s409 = sand.u32 %s58, 1
        %s410 = scalar_lea.sflag [#allocation3], %s409
        %s411 = sand.u32 %s58, 1
        %s412 = smul.addr %s411, 128
        %s413 = scalar_lea.vmem [#allocation2], %s412
        // Predicated region
        $region45: #{tpu_custom_call.1} parent=43 // pred_check
          %p414 = pneg %p71
        $region46: #{tpu_custom_call.1} parent=43 // pred_check_branch
          %416 = sbr.rel (%p414) target = $region48
        $region47: #{tpu_custom_call.1} parent=43 // pred_region
          %417 = dma.done %s410, 2048
        $region48: #{tpu_custom_call.1} parent=43 // pred_fallthru
          _
        %s418 = sand.u32 %s34, 1
        %s419 = scalar_lea.sflag [#allocation6], %s418
        %s420 = sand.u32 %s88, 1
        %s421 = smul.addr %s420, 128
        %s422 = scalar_lea.vmem [#allocation5], %s421
        // Predicated region
        $region49: #{tpu_custom_call.1} parent=43 // pred_check
          %p423 = pneg %p101
        $region50: #{tpu_custom_call.1} parent=43 // pred_check_branch
          %425 = sbr.rel (%p423) target = $region52
        $region51: #{tpu_custom_call.1} parent=43 // pred_region
          %426 = dma.done %s419, 2048
        $region52: #{tpu_custom_call.1} parent=43 // pred_fallthru
          _
        // Predicated region
        $region53: #{tpu_custom_call.1} parent=43 // pred_check
          %p427 = pneg %p152
        $region54: #{tpu_custom_call.1} parent=43 // pred_check_branch
          %429 = sbr.rel (%p427) target = $region56
        $region55: #{tpu_custom_call.1} parent=43 // pred_region
          %430 = dma.done [#allocation6], 2048
        $region56: #{tpu_custom_call.1} parent=43 // pred_fallthru
          _
        // Predicated region
        $region57: #{tpu_custom_call.1} parent=43 // pred_check
          %p431 = pneg %p173
        $region58: #{tpu_custom_call.1} parent=43 // pred_check_branch
          %433 = sbr.rel (%p431) target = $region60
        $region59: #{tpu_custom_call.1} parent=43 // pred_region
          %434 = dma.done [#allocation9], 2048
        $region60: #{tpu_custom_call.1} parent=43 // pred_fallthru
          _
        %s435 = sand.u32 %s58, 1
        %s436 = scalar_lea.sflag [#allocation3], %s435
        %s437 = sand.u32 %s58, 1
        %s438 = smul.addr %s437, 128
        %s439 = scalar_lea.vmem [#allocation2], %s438
        %p440 = pneg %p71
        %p441 = pneg %p68
        %s442 = sand.u32 %s34, 1
        %s443 = scalar_lea.sflag [#allocation6], %s442
        %s444 = sand.u32 %s88, 1
        %s445 = smul.addr %s444, 128
        %s446 = scalar_lea.vmem [#allocation5], %s445
        %p447 = pneg %p101
        %p448 = pneg %p98
        %s449 = smul.u32 %s38, 2
        %s450 = sadd.s32 %s449, %s39
        %p451 = scmp.lt.s32.totalorder %s450, 3
        %s452 = scalar_select %p451, %s450, 3
        %s453 = scalar_lea.vmem %s2, %s452
        %p454 = pneg %p131
        %p455 = pneg %p128
        %p456 = pneg %p152
        %p457 = pneg %p149
        %p458 = pneg %p173
        %p459 = pneg %p170
        %p460 = pneg %p194
        %p461 = pneg %p191
        %p462 = pneg %p220
        %p463 = pneg %p217
        %s464 = sand.u32 %s207, 1
        %s465 = scalar_lea.sflag [#allocation4], %s464
        %s466 = sand.u32 %s207, 1
        %s467 = smul.addr %s466, 2
        %s468 = scalar_lea.vmem [#allocation10], %s467
        %p469 = pneg %p246
        %p470 = pneg %p243
        %s471 = sand.u32 %s233, 1
        %s472 = scalar_lea.sflag [#allocation12], %s471
        %s473 = sand.u32 %s233, 1
        %s474 = smul.addr %s473, 2
        %s475 = scalar_lea.vmem [#allocation11], %s474
        %p476 = pneg %p272
        %p477 = pneg %p269
        %p478 = scmp.lt.s32.totalorder %s38, 1
        %s479 = scalar_select %p478, %s38, 1
        %s480 = smul.addr %s479, 2
        %s481 = scalar_lea.vmem %s8, %s480
        %p482 = pneg %p298
        %p483 = pneg %p295
        %p484 = scmp.lt.s32.totalorder %s38, 1
        %s485 = scalar_select %p484, %s38, 1
        %s486 = scalar_lea.vmem %s9, %s485
        %s487 = smul.u32 %s38, 2
        %s488 = sadd.s32 %s487, %s39
        %s489 = smul.u32 16, %s488
        %s490 = smul.u32 %s38, 2
        %s491 = sadd.s32 %s490, %s39
        %s492 = smul.u32 16, %s491
        %s493 = smul.u32 %s38, 2
        %s494 = sadd.s32 %s493, %s39
        %p495 = scmp.lt.s32.totalorder %s494, 3
        %s496 = scalar_select %p495, %s494, 3
        %s497 = scalar_lea.vmem %s2, %s496
        %s498 = smul.u32 %s38, 2
        %s499 = sadd.s32 %s498, %s39
        %p500 = scmp.lt.s32.totalorder %s38, 1
        %s501 = scalar_select %p500, %s38, 1
        %s502 = smul.addr %s501, 2
        %s503 = scalar_lea.vmem %s8, %s502
        %p504 = scmp.lt.s32.totalorder %s38, 1
        %s505 = scalar_select %p504, %s38, 1
        %s506 = scalar_lea.vmem %s9, %s505
        %p507 = scmp.eq.s32.totalorder %s39, 0
        // Predicated region
        $region61: #{tpu_custom_call.1} parent=43 // pred_check
          %p508 = pneg %p507
        $region62: #{tpu_custom_call.1} parent=43 // pred_check_branch
          %510 = sbr.rel (%p508) target = $region64
        $region63: #{tpu_custom_call.1} parent=43 // pred_region
          %511 = vst [vmem:[%s468] sm:$0x3] 0.0
          %512 = vst [vmem:[%s475] sm:$0x3] 0.0
          %vm513 = vcmask 1024
          %514 = vst.msk [vmem:[%s503] sm:$0x3] %vm513, 0.0
          %vm515 = vcmask 0
          %516 = vst.msk [vmem:[%s506] sm:$0x1] %vm515, 0.0
        $region64: #{tpu_custom_call.1} parent=43 // pred_fallthru
          _
        %v517 = vld [vmem:[%s413] sm:$0xff]
        %v518 = vld [vmem:[%s413 + $0x8] sm:$0xff]
        %v519 = vld [vmem:[%s413 + $0x10] sm:$0xff]
        %v520 = vld [vmem:[%s413 + $0x18] sm:$0xff]
        %v521 = vld [vmem:[%s413 + $0x20] sm:$0xff]
        %v522 = vld [vmem:[%s413 + $0x28] sm:$0xff]
        %v523 = vld [vmem:[%s413 + $0x30] sm:$0xff]
        %v524 = vld [vmem:[%s413 + $0x38] sm:$0xff]
        %v525 = vld [vmem:[%s413 + $0x40] sm:$0xff]
        %v526 = vld [vmem:[%s413 + $0x48] sm:$0xff]
        %v527 = vld [vmem:[%s413 + $0x50] sm:$0xff]
        %v528 = vld [vmem:[%s413 + $0x58] sm:$0xff]
        %v529 = vld [vmem:[%s413 + $0x60] sm:$0xff]
        %v530 = vld [vmem:[%s413 + $0x68] sm:$0xff]
        %v531 = vld [vmem:[%s413 + $0x70] sm:$0xff]
        %v532 = vld [vmem:[%s413 + $0x78] sm:$0xff]
        %v533 = vld [vmem:[#allocation7] sm:$0xff]
        %v534 = vld [vmem:[#allocation7 + $0x8] sm:$0xff]
        %v535 = vld [vmem:[#allocation7 + $0x10] sm:$0xff]
        %v536 = vld [vmem:[#allocation7 + $0x18] sm:$0xff]
        %v537 = vld [vmem:[#allocation7 + $0x20] sm:$0xff]
        %v538 = vld [vmem:[#allocation7 + $0x28] sm:$0xff]
        %v539 = vld [vmem:[#allocation7 + $0x30] sm:$0xff]
        %v540 = vld [vmem:[#allocation7 + $0x38] sm:$0xff]
        %v541 = vld [vmem:[#allocation7 + $0x40] sm:$0xff]
        %v542 = vld [vmem:[#allocation7 + $0x48] sm:$0xff]
        %v543 = vld [vmem:[#allocation7 + $0x50] sm:$0xff]
        %v544 = vld [vmem:[#allocation7 + $0x58] sm:$0xff]
        %v545 = vld [vmem:[#allocation7 + $0x60] sm:$0xff]
        %v546 = vld [vmem:[#allocation7 + $0x68] sm:$0xff]
        %v547 = vld [vmem:[#allocation7 + $0x70] sm:$0xff]
        %v548 = vld [vmem:[#allocation7 + $0x78] sm:$0xff]
        %549 = vmatprep.subr.mxu0 0.0
        %550 = vmatpush1.msra.mxu0 %v533
        %551 = vmatprep.subr.mxu0 0.0
        %552 = vmatpush1.msra.mxu0 %v534
        %553 = vmatprep.subr.mxu0 0.0
        %554 = vmatpush1.msra.mxu0 %v535
        %555 = vmatprep.subr.mxu0 0.0
        %556 = vmatpush1.msra.mxu0 %v536
        %557 = vmatprep.subr.mxu0 0.0
        %558 = vmatpush1.msra.mxu0 %v537
        %559 = vmatprep.subr.mxu0 0.0
        %560 = vmatpush1.msra.mxu0 %v538
        %561 = vmatprep.subr.mxu0 0.0
        %562 = vmatpush1.msra.mxu0 %v539
        %563 = vmatprep.subr.mxu0 0.0
        %564 = vmatpush1.msra.mxu0 %v540
        %565 = vmatprep.subr.mxu0 0.0
        %566 = vmatpush1.msra.mxu0 %v541
        %567 = vmatprep.subr.mxu0 0.0
        %568 = vmatpush1.msra.mxu0 %v542
        %569 = vmatprep.subr.mxu0 0.0
        %570 = vmatpush1.msra.mxu0 %v543
        %571 = vmatprep.subr.mxu0 0.0
        %572 = vmatpush1.msra.mxu0 %v544
        %573 = vmatprep.subr.mxu0 0.0
        %574 = vmatpush1.msra.mxu0 %v545
        %575 = vmatprep.subr.mxu0 0.0
        %576 = vmatpush1.msra.mxu0 %v546
        %577 = vmatprep.subr.mxu0 0.0
        %578 = vmatpush1.msra.mxu0 %v547
        %579 = vmatprep.subr.mxu0 0.0
        %580 = vmatpush1.msra.mxu0 %v548
        %581 = vmatprep.subr.mxu0 0.0
        %582 = vmatpush1.msra.mxu0 0.0
        %583 = vmatprep.subr.mxu0 0.0
        %584 = vmatpush1.msra.mxu0 0.0
        %585 = vmatprep.subr.mxu0 0.0
        %586 = vmatpush1.msra.mxu0 0.0
        %587 = vmatprep.subr.mxu0 0.0
        %588 = vmatpush1.msra.mxu0 0.0
        %589 = vmatprep.subr.mxu0 0.0
        %590 = vmatpush1.msra.mxu0 0.0
        %591 = vmatprep.subr.mxu0 0.0
        %592 = vmatpush1.msra.mxu0 0.0
        %593 = vmatprep.subr.mxu0 0.0
        %594 = vmatpush1.msra.mxu0 0.0
        %595 = vmatprep.subr.mxu0 0.0
        %596 = vmatpush1.msra.mxu0 0.0
        %597 = vmatprep.subr.mxu0 0.0
        %598 = vmatpush1.msra.mxu0 0.0
        %599 = vmatprep.subr.mxu0 0.0
        %600 = vmatpush1.msra.mxu0 0.0
        %601 = vmatprep.subr.mxu0 0.0
        %602 = vmatpush1.msra.mxu0 0.0
        %603 = vmatprep.subr.mxu0 0.0
        %604 = vmatpush1.msra.mxu0 0.0
        %605 = vmatprep.subr.mxu0 0.0
        %606 = vmatpush1.msra.mxu0 0.0
        %607 = vmatprep.subr.mxu0 0.0
        %608 = vmatpush1.msra.mxu0 0.0
        %609 = vmatprep.subr.mxu0 0.0
        %610 = vmatpush1.msra.mxu0 0.0
        %611 = vmatprep.subr.mxu0 0.0
        %612 = vmatpush1.msra.mxu0 0.0
        %613 = vmatprep.mubr.f32.mxu0 0.0
        %614 = vmatmul.mubr.f32.gmra.mrb[0].mxu0 %v517
        %v615 = vpop.f32.mrb[0].mxu0
        %v616 = vadd.f32 0.0, %v615
        %v617 = vpop.f32.mrb[0].mxu0
        %618 = vmatprep.mubr.f32.mxu0 0.0
        %619 = vmatmul.mubr.f32.gmra.mrb[0].mxu0 %v518
        %v620 = vpop.f32.mrb[0].mxu0
        %v621 = vadd.f32 0.0, %v620
        %v622 = vpop.f32.mrb[0].mxu0
        %623 = vmatprep.mubr.f32.mxu0 0.0
        %624 = vmatmul.mubr.f32.gmra.mrb[0].mxu0 %v519
        %v625 = vpop.f32.mrb[0].mxu0
        %v626 = vadd.f32 0.0, %v625
        %v627 = vpop.f32.mrb[0].mxu0
        %628 = vmatprep.mubr.f32.mxu0 0.0
        %629 = vmatmul.mubr.f32.gmra.mrb[0].mxu0 %v520
        %v630 = vpop.f32.mrb[0].mxu0
        %v631 = vadd.f32 0.0, %v630
        %v632 = vpop.f32.mrb[0].mxu0
        %633 = vmatprep.mubr.f32.mxu0 0.0
        %634 = vmatmul.mubr.f32.gmra.mrb[0].mxu0 %v521
        %v635 = vpop.f32.mrb[0].mxu0
        %v636 = vadd.f32 0.0, %v635
        %v637 = vpop.f32.mrb[0].mxu0
        %638 = vmatprep.mubr.f32.mxu0 0.0
        %639 = vmatmul.mubr.f32.gmra.mrb[0].mxu0 %v522
        %v640 = vpop.f32.mrb[0].mxu0
        %v641 = vadd.f32 0.0, %v640
        %v642 = vpop.f32.mrb[0].mxu0
        %643 = vmatprep.mubr.f32.mxu0 0.0
        %644 = vmatmul.mubr.f32.gmra.mrb[0].mxu0 %v523
        %v645 = vpop.f32.mrb[0].mxu0
        %v646 = vadd.f32 0.0, %v645
        %v647 = vpop.f32.mrb[0].mxu0
        %648 = vmatprep.mubr.f32.mxu0 0.0
        %649 = vmatmul.mubr.f32.gmra.mrb[0].mxu0 %v524
        %v650 = vpop.f32.mrb[0].mxu0
        %v651 = vadd.f32 0.0, %v650
        %v652 = vpop.f32.mrb[0].mxu0
        %653 = vmatprep.mubr.f32.mxu0 0.0
        %654 = vmatmul.mubr.f32.gmra.mrb[0].mxu0 %v525
        %v655 = vpop.f32.mrb[0].mxu0
        %v656 = vadd.f32 0.0, %v655
        %v657 = vpop.f32.mrb[0].mxu0
        %658 = vmatprep.mubr.f32.mxu0 0.0
        %659 = vmatmul.mubr.f32.gmra.mrb[0].mxu0 %v526
        %v660 = vpop.f32.mrb[0].mxu0
        %v661 = vadd.f32 0.0, %v660
        %v662 = vpop.f32.mrb[0].mxu0
        %663 = vmatprep.mubr.f32.mxu0 0.0
        %664 = vmatmul.mubr.f32.gmra.mrb[0].mxu0 %v527
        %v665 = vpop.f32.mrb[0].mxu0
        %v666 = vadd.f32 0.0, %v665
        %v667 = vpop.f32.mrb[0].mxu0
        %668 = vmatprep.mubr.f32.mxu0 0.0
        %669 = vmatmul.mubr.f32.gmra.mrb[0].mxu0 %v528
        %v670 = vpop.f32.mrb[0].mxu0
        %v671 = vadd.f32 0.0, %v670
        %v672 = vpop.f32.mrb[0].mxu0
        %673 = vmatprep.mubr.f32.mxu0 0.0
        %674 = vmatmul.mubr.f32.gmra.mrb[0].mxu0 %v529
        %v675 = vpop.f32.mrb[0].mxu0
        %v676 = vadd.f32 0.0, %v675
        %v677 = vpop.f32.mrb[0].mxu0
        %678 = vmatprep.mubr.f32.mxu0 0.0
        %679 = vmatmul.mubr.f32.gmra.mrb[0].mxu0 %v530
        %v680 = vpop.f32.mrb[0].mxu0
        %v681 = vadd.f32 0.0, %v680
        %v682 = vpop.f32.mrb[0].mxu0
        %683 = vmatprep.mubr.f32.mxu0 0.0
        %684 = vmatmul.mubr.f32.gmra.mrb[0].mxu0 %v531
        %v685 = vpop.f32.mrb[0].mxu0
        %v686 = vadd.f32 0.0, %v685
        %v687 = vpop.f32.mrb[0].mxu0
        %688 = vmatprep.mubr.f32.mxu0 0.0
        %689 = vmatmul.mubr.f32.gmra.mrb[0].mxu0 %v532
        %v690 = vpop.f32.mrb[0].mxu0
        %v691 = vadd.f32 0.0, %v690
        %v692 = vpop.f32.mrb[0].mxu0
        %693 = vdwg.mxu0
        %v694 = vld [vmem:[%s5] sm:$0x1]
        %v695 = vmul.f32 %v616, 2.0
        %v696 = vmul.f32 %v621, 2.0
        %v697 = vmul.f32 %v626, 2.0
        %v698 = vmul.f32 %v631, 2.0
        %v699 = vmul.f32 %v636, 2.0
        %v700 = vmul.f32 %v641, 2.0
        %v701 = vmul.f32 %v646, 2.0
        %v702 = vmul.f32 %v651, 2.0
        %v703 = vmul.f32 %v656, 2.0
        %v704 = vmul.f32 %v661, 2.0
        %v705 = vmul.f32 %v666, 2.0
        %v706 = vmul.f32 %v671, 2.0
        %v707 = vmul.f32 %v676, 2.0
        %v708 = vmul.f32 %v681, 2.0
        %v709 = vmul.f32 %v686, 2.0
        %v710 = vmul.f32 %v691, 2.0
        %v712 = vlaneseq
        %v713 = vshrl.u32 %v712, 7
        %v714 = vsub.s32 0, %v713
        %v715 = vrot.slane %v694, %v714
        %v717 = vsub.f32 %v715, %v695
        %v718 = vsub.f32 %v715, %v696
        %v719 = vsub.f32 %v715, %v697
        %v720 = vsub.f32 %v715, %v698
        %v721 = vsub.f32 %v715, %v699
        %v722 = vsub.f32 %v715, %v700
        %v723 = vsub.f32 %v715, %v701
        %v724 = vsub.f32 %v715, %v702
        %v725 = vsub.f32 %v715, %v703
        %v726 = vsub.f32 %v715, %v704
        %v727 = vsub.f32 %v715, %v705
        %v728 = vsub.f32 %v715, %v706
        %v729 = vsub.f32 %v715, %v707
        %v730 = vsub.f32 %v715, %v708
        %v731 = vsub.f32 %v715, %v709
        %v732 = vsub.f32 %v715, %v710
        %733 = vmin.xlane.f32.xlu0 %v717
        %v734 = vpop.xlane.xlu0 %733
        %735 = vmin.xlane.f32.xlu0 %v718
        %v736 = vpop.xlane.xlu0 %735
        %737 = vmin.xlane.f32.xlu0 %v719
        %v738 = vpop.xlane.xlu0 %737
        %739 = vmin.xlane.f32.xlu0 %v720
        %v740 = vpop.xlane.xlu0 %739
        %741 = vmin.xlane.f32.xlu0 %v721
        %v742 = vpop.xlane.xlu0 %741
        %743 = vmin.xlane.f32.xlu0 %v722
        %v744 = vpop.xlane.xlu0 %743
        %745 = vmin.xlane.f32.xlu0 %v723
        %v746 = vpop.xlane.xlu0 %745
        %747 = vmin.xlane.f32.xlu0 %v724
        %v748 = vpop.xlane.xlu0 %747
        %749 = vmin.xlane.f32.xlu0 %v725
        %v750 = vpop.xlane.xlu0 %749
        %751 = vmin.xlane.f32.xlu0 %v726
        %v752 = vpop.xlane.xlu0 %751
        %753 = vmin.xlane.f32.xlu0 %v727
        %v754 = vpop.xlane.xlu0 %753
        %755 = vmin.xlane.f32.xlu0 %v728
        %v756 = vpop.xlane.xlu0 %755
        %757 = vmin.xlane.f32.xlu0 %v729
        %v758 = vpop.xlane.xlu0 %757
        %759 = vmin.xlane.f32.xlu0 %v730
        %v760 = vpop.xlane.xlu0 %759
        %761 = vmin.xlane.f32.xlu0 %v731
        %v762 = vpop.xlane.xlu0 %761
        %763 = vmin.xlane.f32.xlu0 %v732
        %v764 = vpop.xlane.xlu0 %763
        %v765 = vlaneseq
        %v766 = vand.u32 %v765, 127
        %vm767 = vcmp.le.f32.partialorder %v717, %v734
        %vm768 = vcmp.le.f32.partialorder %v718, %v736
        %vm769 = vcmp.le.f32.partialorder %v719, %v738
        %vm770 = vcmp.le.f32.partialorder %v720, %v740
        %vm771 = vcmp.le.f32.partialorder %v721, %v742
        %vm772 = vcmp.le.f32.partialorder %v722, %v744
        %vm773 = vcmp.le.f32.partialorder %v723, %v746
        %vm774 = vcmp.le.f32.partialorder %v724, %v748
        %vm775 = vcmp.le.f32.partialorder %v725, %v750
        %vm776 = vcmp.le.f32.partialorder %v726, %v752
        %vm777 = vcmp.le.f32.partialorder %v727, %v754
        %vm778 = vcmp.le.f32.partialorder %v728, %v756
        %vm779 = vcmp.le.f32.partialorder %v729, %v758
        %vm780 = vcmp.le.f32.partialorder %v730, %v760
        %vm781 = vcmp.le.f32.partialorder %v731, %v762
        %vm782 = vcmp.le.f32.partialorder %v732, %v764
        %v783 = vsel %vm767, %v766, 128
        %v784 = vsel %vm768, %v766, 128
        %v785 = vsel %vm769, %v766, 128
        %v786 = vsel %vm770, %v766, 128
        %v787 = vsel %vm771, %v766, 128
        %v788 = vsel %vm772, %v766, 128
        %v789 = vsel %vm773, %v766, 128
        %v790 = vsel %vm774, %v766, 128
        %v791 = vsel %vm775, %v766, 128
        %v792 = vsel %vm776, %v766, 128
        %v793 = vsel %vm777, %v766, 128
        %v794 = vsel %vm778, %v766, 128
        %v795 = vsel %vm779, %v766, 128
        %v796 = vsel %vm780, %v766, 128
        %v797 = vsel %vm781, %v766, 128
        %v798 = vsel %vm782, %v766, 128
        %v799 = vand.u32 %v783, 65535
        %v800 = vshra.s32 %v783, 16
        %v801 = vcvt.s32.f32 %v799
        %v802 = vcvt.s32.f32 %v800
        %803 = vmin.xlane.f32.xlu0 %v802
        %v804 = vpop.xlane.xlu0 %803
        %vm805 = vcmp.eq.f32.partialorder %v802, %v804
        %v806 = vsel %vm805, %v801, inf
        %807 = vmin.xlane.f32.xlu0 %v806
        %v808 = vpop.xlane.xlu0 %807
        %v809 = vcvt.f32.s32 %v808
        %v810 = vcvt.f32.s32 %v804
        %v811 = vshll.u32 %v810, 16
        %v812 = vadd.s32 %v811, %v809
        %v813 = vand.u32 %v784, 65535
        %v814 = vshra.s32 %v784, 16
        %v815 = vcvt.s32.f32 %v813
        %v816 = vcvt.s32.f32 %v814
        %817 = vmin.xlane.f32.xlu0 %v816
        %v818 = vpop.xlane.xlu0 %817
        %vm819 = vcmp.eq.f32.partialorder %v816, %v818
        %v820 = vsel %vm819, %v815, inf
        %821 = vmin.xlane.f32.xlu0 %v820
        %v822 = vpop.xlane.xlu0 %821
        %v823 = vcvt.f32.s32 %v822
        %v824 = vcvt.f32.s32 %v818
        %v825 = vshll.u32 %v824, 16
        %v826 = vadd.s32 %v825, %v823
        %v827 = vand.u32 %v785, 65535
        %v828 = vshra.s32 %v785, 16
        %v829 = vcvt.s32.f32 %v827
        %v830 = vcvt.s32.f32 %v828
        %831 = vmin.xlane.f32.xlu0 %v830
        %v832 = vpop.xlane.xlu0 %831
        %vm833 = vcmp.eq.f32.partialorder %v830, %v832
        %v834 = vsel %vm833, %v829, inf
        %835 = vmin.xlane.f32.xlu0 %v834
        %v836 = vpop.xlane.xlu0 %835
        %v837 = vcvt.f32.s32 %v836
        %v838 = vcvt.f32.s32 %v832
        %v839 = vshll.u32 %v838, 16
        %v840 = vadd.s32 %v839, %v837
        %v841 = vand.u32 %v786, 65535
        %v842 = vshra.s32 %v786, 16
        %v843 = vcvt.s32.f32 %v841
        %v844 = vcvt.s32.f32 %v842
        %845 = vmin.xlane.f32.xlu0 %v844
        %v846 = vpop.xlane.xlu0 %845
        %vm847 = vcmp.eq.f32.partialorder %v844, %v846
        %v848 = vsel %vm847, %v843, inf
        %849 = vmin.xlane.f32.xlu0 %v848
        %v850 = vpop.xlane.xlu0 %849
        %v851 = vcvt.f32.s32 %v850
        %v852 = vcvt.f32.s32 %v846
        %v853 = vshll.u32 %v852, 16
        %v854 = vadd.s32 %v853, %v851
        %v855 = vand.u32 %v787, 65535
        %v856 = vshra.s32 %v787, 16
        %v857 = vcvt.s32.f32 %v855
        %v858 = vcvt.s32.f32 %v856
        %859 = vmin.xlane.f32.xlu0 %v858
        %v860 = vpop.xlane.xlu0 %859
        %vm861 = vcmp.eq.f32.partialorder %v858, %v860
        %v862 = vsel %vm861, %v857, inf
        %863 = vmin.xlane.f32.xlu0 %v862
        %v864 = vpop.xlane.xlu0 %863
        %v865 = vcvt.f32.s32 %v864
        %v866 = vcvt.f32.s32 %v860
        %v867 = vshll.u32 %v866, 16
        %v868 = vadd.s32 %v867, %v865
        %v869 = vand.u32 %v788, 65535
        %v870 = vshra.s32 %v788, 16
        %v871 = vcvt.s32.f32 %v869
        %v872 = vcvt.s32.f32 %v870
        %873 = vmin.xlane.f32.xlu0 %v872
        %v874 = vpop.xlane.xlu0 %873
        %vm875 = vcmp.eq.f32.partialorder %v872, %v874
        %v876 = vsel %vm875, %v871, inf
        %877 = vmin.xlane.f32.xlu0 %v876
        %v878 = vpop.xlane.xlu0 %877
        %v879 = vcvt.f32.s32 %v878
        %v880 = vcvt.f32.s32 %v874
        %v881 = vshll.u32 %v880, 16
        %v882 = vadd.s32 %v881, %v879
        %v883 = vand.u32 %v789, 65535
        %v884 = vshra.s32 %v789, 16
        %v885 = vcvt.s32.f32 %v883
        %v886 = vcvt.s32.f32 %v884
        %887 = vmin.xlane.f32.xlu0 %v886
        %v888 = vpop.xlane.xlu0 %887
        %vm889 = vcmp.eq.f32.partialorder %v886, %v888
        %v890 = vsel %vm889, %v885, inf
        %891 = vmin.xlane.f32.xlu0 %v890
        %v892 = vpop.xlane.xlu0 %891
        %v893 = vcvt.f32.s32 %v892
        %v894 = vcvt.f32.s32 %v888
        %v895 = vshll.u32 %v894, 16
        %v896 = vadd.s32 %v895, %v893
        %v897 = vand.u32 %v790, 65535
        %v898 = vshra.s32 %v790, 16
        %v899 = vcvt.s32.f32 %v897
        %v900 = vcvt.s32.f32 %v898
        %901 = vmin.xlane.f32.xlu0 %v900
        %v902 = vpop.xlane.xlu0 %901
        %vm903 = vcmp.eq.f32.partialorder %v900, %v902
        %v904 = vsel %vm903, %v899, inf
        %905 = vmin.xlane.f32.xlu0 %v904
        %v906 = vpop.xlane.xlu0 %905
        %v907 = vcvt.f32.s32 %v906
        %v908 = vcvt.f32.s32 %v902
        %v909 = vshll.u32 %v908, 16
        %v910 = vadd.s32 %v909, %v907
        %v911 = vand.u32 %v791, 65535
        %v912 = vshra.s32 %v791, 16
        %v913 = vcvt.s32.f32 %v911
        %v914 = vcvt.s32.f32 %v912
        %915 = vmin.xlane.f32.xlu0 %v914
        %v916 = vpop.xlane.xlu0 %915
        %vm917 = vcmp.eq.f32.partialorder %v914, %v916
        %v918 = vsel %vm917, %v913, inf
        %919 = vmin.xlane.f32.xlu0 %v918
        %v920 = vpop.xlane.xlu0 %919
        %v921 = vcvt.f32.s32 %v920
        %v922 = vcvt.f32.s32 %v916
        %v923 = vshll.u32 %v922, 16
        %v924 = vadd.s32 %v923, %v921
        %v925 = vand.u32 %v792, 65535
        %v926 = vshra.s32 %v792, 16
        %v927 = vcvt.s32.f32 %v925
        %v928 = vcvt.s32.f32 %v926
        %929 = vmin.xlane.f32.xlu0 %v928
        %v930 = vpop.xlane.xlu0 %929
        %vm931 = vcmp.eq.f32.partialorder %v928, %v930
        %v932 = vsel %vm931, %v927, inf
        %933 = vmin.xlane.f32.xlu0 %v932
        %v934 = vpop.xlane.xlu0 %933
        %v935 = vcvt.f32.s32 %v934
        %v936 = vcvt.f32.s32 %v930
        %v937 = vshll.u32 %v936, 16
        %v938 = vadd.s32 %v937, %v935
        %v939 = vand.u32 %v793, 65535
        %v940 = vshra.s32 %v793, 16
        %v941 = vcvt.s32.f32 %v939
        %v942 = vcvt.s32.f32 %v940
        %943 = vmin.xlane.f32.xlu0 %v942
        %v944 = vpop.xlane.xlu0 %943
        %vm945 = vcmp.eq.f32.partialorder %v942, %v944
        %v946 = vsel %vm945, %v941, inf
        %947 = vmin.xlane.f32.xlu0 %v946
        %v948 = vpop.xlane.xlu0 %947
        %v949 = vcvt.f32.s32 %v948
        %v950 = vcvt.f32.s32 %v944
        %v951 = vshll.u32 %v950, 16
        %v952 = vadd.s32 %v951, %v949
        %v953 = vand.u32 %v794, 65535
        %v954 = vshra.s32 %v794, 16
        %v955 = vcvt.s32.f32 %v953
        %v956 = vcvt.s32.f32 %v954
        %957 = vmin.xlane.f32.xlu0 %v956
        %v958 = vpop.xlane.xlu0 %957
        %vm959 = vcmp.eq.f32.partialorder %v956, %v958
        %v960 = vsel %vm959, %v955, inf
        %961 = vmin.xlane.f32.xlu0 %v960
        %v962 = vpop.xlane.xlu0 %961
        %v963 = vcvt.f32.s32 %v962
        %v964 = vcvt.f32.s32 %v958
        %v965 = vshll.u32 %v964, 16
        %v966 = vadd.s32 %v965, %v963
        %v967 = vand.u32 %v795, 65535
        %v968 = vshra.s32 %v795, 16
        %v969 = vcvt.s32.f32 %v967
        %v970 = vcvt.s32.f32 %v968
        %971 = vmin.xlane.f32.xlu0 %v970
        %v972 = vpop.xlane.xlu0 %971
        %vm973 = vcmp.eq.f32.partialorder %v970, %v972
        %v974 = vsel %vm973, %v969, inf
        %975 = vmin.xlane.f32.xlu0 %v974
        %v976 = vpop.xlane.xlu0 %975
        %v977 = vcvt.f32.s32 %v976
        %v978 = vcvt.f32.s32 %v972
        %v979 = vshll.u32 %v978, 16
        %v980 = vadd.s32 %v979, %v977
        %v981 = vand.u32 %v796, 65535
        %v982 = vshra.s32 %v796, 16
        %v983 = vcvt.s32.f32 %v981
        %v984 = vcvt.s32.f32 %v982
        %985 = vmin.xlane.f32.xlu0 %v984
        %v986 = vpop.xlane.xlu0 %985
        %vm987 = vcmp.eq.f32.partialorder %v984, %v986
        %v988 = vsel %vm987, %v983, inf
        %989 = vmin.xlane.f32.xlu0 %v988
        %v990 = vpop.xlane.xlu0 %989
        %v991 = vcvt.f32.s32 %v990
        %v992 = vcvt.f32.s32 %v986
        %v993 = vshll.u32 %v992, 16
        %v994 = vadd.s32 %v993, %v991
        %v995 = vand.u32 %v797, 65535
        %v996 = vshra.s32 %v797, 16
        %v997 = vcvt.s32.f32 %v995
        %v998 = vcvt.s32.f32 %v996
        %999 = vmin.xlane.f32.xlu0 %v998
        %v1000 = vpop.xlane.xlu0 %999
        %vm1001 = vcmp.eq.f32.partialorder %v998, %v1000
        %v1002 = vsel %vm1001, %v997, inf
        %1003 = vmin.xlane.f32.xlu0 %v1002
        %v1004 = vpop.xlane.xlu0 %1003
        %v1005 = vcvt.f32.s32 %v1004
        %v1006 = vcvt.f32.s32 %v1000
        %v1007 = vshll.u32 %v1006, 16
        %v1008 = vadd.s32 %v1007, %v1005
        %v1009 = vand.u32 %v798, 65535
        %v1010 = vshra.s32 %v798, 16
        %v1011 = vcvt.s32.f32 %v1009
        %v1012 = vcvt.s32.f32 %v1010
        %1013 = vmin.xlane.f32.xlu0 %v1012
        %v1014 = vpop.xlane.xlu0 %1013
        %vm1015 = vcmp.eq.f32.partialorder %v1012, %v1014
        %v1016 = vsel %vm1015, %v1011, inf
        %1017 = vmin.xlane.f32.xlu0 %v1016
        %v1018 = vpop.xlane.xlu0 %1017
        %v1019 = vcvt.f32.s32 %v1018
        %v1020 = vcvt.f32.s32 %v1014
        %v1021 = vshll.u32 %v1020, 16
        %v1022 = vadd.s32 %v1021, %v1019
        %vm1023 = vcmp.eq.s32.totalorder %v766, %v812
        %vm1024 = vcmp.eq.s32.totalorder %v766, %v826
        %vm1025 = vcmp.eq.s32.totalorder %v766, %v840
        %vm1026 = vcmp.eq.s32.totalorder %v766, %v854
        %vm1027 = vcmp.eq.s32.totalorder %v766, %v868
        %vm1028 = vcmp.eq.s32.totalorder %v766, %v882
        %vm1029 = vcmp.eq.s32.totalorder %v766, %v896
        %vm1030 = vcmp.eq.s32.totalorder %v766, %v910
        %vm1031 = vcmp.eq.s32.totalorder %v766, %v924
        %vm1032 = vcmp.eq.s32.totalorder %v766, %v938
        %vm1033 = vcmp.eq.s32.totalorder %v766, %v952
        %vm1034 = vcmp.eq.s32.totalorder %v766, %v966
        %vm1035 = vcmp.eq.s32.totalorder %v766, %v980
        %vm1036 = vcmp.eq.s32.totalorder %v766, %v994
        %vm1037 = vcmp.eq.s32.totalorder %v766, %v1008
        %vm1038 = vcmp.eq.s32.totalorder %v766, %v1022
        %v1039 = vsel %vm1023, 1, 0
        %v1040 = vsel %vm1024, 1, 0
        %v1041 = vsel %vm1025, 1, 0
        %v1042 = vsel %vm1026, 1, 0
        %v1043 = vsel %vm1027, 1, 0
        %v1044 = vsel %vm1028, 1, 0
        %v1045 = vsel %vm1029, 1, 0
        %v1046 = vsel %vm1030, 1, 0
        %v1047 = vsel %vm1031, 1, 0
        %v1048 = vsel %vm1032, 1, 0
        %v1049 = vsel %vm1033, 1, 0
        %v1050 = vsel %vm1034, 1, 0
        %v1051 = vsel %vm1035, 1, 0
        %v1052 = vsel %vm1036, 1, 0
        %v1053 = vsel %vm1037, 1, 0
        %v1054 = vsel %vm1038, 1, 0
        %v1055 = vcvt.s32.f32 %v1039
        %v1056 = vcvt.s32.f32 %v1040
        %v1057 = vcvt.s32.f32 %v1041
        %v1058 = vcvt.s32.f32 %v1042
        %v1059 = vcvt.s32.f32 %v1043
        %v1060 = vcvt.s32.f32 %v1044
        %v1061 = vcvt.s32.f32 %v1045
        %v1062 = vcvt.s32.f32 %v1046
        %v1063 = vcvt.s32.f32 %v1047
        %v1064 = vcvt.s32.f32 %v1048
        %v1065 = vcvt.s32.f32 %v1049
        %v1066 = vcvt.s32.f32 %v1050
        %v1067 = vcvt.s32.f32 %v1051
        %v1068 = vcvt.s32.f32 %v1052
        %v1069 = vcvt.s32.f32 %v1053
        %v1070 = vcvt.s32.f32 %v1054
        %v1071 = vld [vmem:[#allocation8] sm:$0xff]
        %v1072 = vld [vmem:[#allocation8 + $0x8] sm:$0xff]
        %v1073 = vld [vmem:[#allocation8 + $0x10] sm:$0xff]
        %v1074 = vld [vmem:[#allocation8 + $0x18] sm:$0xff]
        %v1075 = vld [vmem:[#allocation8 + $0x20] sm:$0xff]
        %v1076 = vld [vmem:[#allocation8 + $0x28] sm:$0xff]
        %v1077 = vld [vmem:[#allocation8 + $0x30] sm:$0xff]
        %v1078 = vld [vmem:[#allocation8 + $0x38] sm:$0xff]
        %v1079 = vld [vmem:[#allocation8 + $0x40] sm:$0xff]
        %v1080 = vld [vmem:[#allocation8 + $0x48] sm:$0xff]
        %v1081 = vld [vmem:[#allocation8 + $0x50] sm:$0xff]
        %v1082 = vld [vmem:[#allocation8 + $0x58] sm:$0xff]
        %v1083 = vld [vmem:[#allocation8 + $0x60] sm:$0xff]
        %v1084 = vld [vmem:[#allocation8 + $0x68] sm:$0xff]
        %v1085 = vld [vmem:[#allocation8 + $0x70] sm:$0xff]
        %v1086 = vld [vmem:[#allocation8 + $0x78] sm:$0xff]
        %1087 = vmatprep.subr.mxu0 0.0
        %1088 = vmatpush1.msra.mxu0 %v1071
        %1089 = vmatprep.subr.mxu0 0.0
        %1090 = vmatpush1.msra.mxu0 %v1072
        %1091 = vmatprep.subr.mxu0 0.0
        %1092 = vmatpush1.msra.mxu0 %v1073
        %1093 = vmatprep.subr.mxu0 0.0
        %1094 = vmatpush1.msra.mxu0 %v1074
        %1095 = vmatprep.subr.mxu0 0.0
        %1096 = vmatpush1.msra.mxu0 %v1075
        %1097 = vmatprep.subr.mxu0 0.0
        %1098 = vmatpush1.msra.mxu0 %v1076
        %1099 = vmatprep.subr.mxu0 0.0
        %1100 = vmatpush1.msra.mxu0 %v1077
        %1101 = vmatprep.subr.mxu0 0.0
        %1102 = vmatpush1.msra.mxu0 %v1078
        %1103 = vmatprep.subr.mxu0 0.0
        %1104 = vmatpush1.msra.mxu0 %v1079
        %1105 = vmatprep.subr.mxu0 0.0
        %1106 = vmatpush1.msra.mxu0 %v1080
        %1107 = vmatprep.subr.mxu0 0.0
        %1108 = vmatpush1.msra.mxu0 %v1081
        %1109 = vmatprep.subr.mxu0 0.0
        %1110 = vmatpush1.msra.mxu0 %v1082
        %1111 = vmatprep.subr.mxu0 0.0
        %1112 = vmatpush1.msra.mxu0 %v1083
        %1113 = vmatprep.subr.mxu0 0.0
        %1114 = vmatpush1.msra.mxu0 %v1084
        %1115 = vmatprep.subr.mxu0 0.0
        %1116 = vmatpush1.msra.mxu0 %v1085
        %1117 = vmatprep.subr.mxu0 0.0
        %1118 = vmatpush1.msra.mxu0 %v1086
        %1119 = vmatprep.subr.mxu0 0.0
        %1120 = vmatpush1.msra.mxu0 0.0
        %1121 = vmatprep.subr.mxu0 0.0
        %1122 = vmatpush1.msra.mxu0 0.0
        %1123 = vmatprep.subr.mxu0 0.0
        %1124 = vmatpush1.msra.mxu0 0.0
        %1125 = vmatprep.subr.mxu0 0.0
        %1126 = vmatpush1.msra.mxu0 0.0
        %1127 = vmatprep.subr.mxu0 0.0
        %1128 = vmatpush1.msra.mxu0 0.0
        %1129 = vmatprep.subr.mxu0 0.0
        %1130 = vmatpush1.msra.mxu0 0.0
        %1131 = vmatprep.subr.mxu0 0.0
        %1132 = vmatpush1.msra.mxu0 0.0
        %1133 = vmatprep.subr.mxu0 0.0
        %1134 = vmatpush1.msra.mxu0 0.0
        %1135 = vmatprep.subr.mxu0 0.0
        %1136 = vmatpush1.msra.mxu0 0.0
        %1137 = vmatprep.subr.mxu0 0.0
        %1138 = vmatpush1.msra.mxu0 0.0
        %1139 = vmatprep.subr.mxu0 0.0
        %1140 = vmatpush1.msra.mxu0 0.0
        %1141 = vmatprep.subr.mxu0 0.0
        %1142 = vmatpush1.msra.mxu0 0.0
        %1143 = vmatprep.subr.mxu0 0.0
        %1144 = vmatpush1.msra.mxu0 0.0
        %1145 = vmatprep.subr.mxu0 0.0
        %1146 = vmatpush1.msra.mxu0 0.0
        %1147 = vmatprep.subr.mxu0 0.0
        %1148 = vmatpush1.msra.mxu0 0.0
        %1149 = vmatprep.subr.mxu0 0.0
        %1150 = vmatpush1.msra.mxu0 0.0
        %1151 = vmatprep.mubr.f32.mxu0 0.0
        %1152 = vmatmul.mubr.f32.gmra.mrb[0].mxu0 %v1055
        %v1153 = vpop.f32.mrb[0].mxu0
        %v1154 = vadd.f32 0.0, %v1153
        %v1155 = vpop.f32.mrb[0].mxu0
        %1156 = vmatprep.mubr.f32.mxu0 0.0
        %1157 = vmatmul.mubr.f32.gmra.mrb[0].mxu0 %v1056
        %v1158 = vpop.f32.mrb[0].mxu0
        %v1159 = vadd.f32 0.0, %v1158
        %v1160 = vpop.f32.mrb[0].mxu0
        %1161 = vmatprep.mubr.f32.mxu0 0.0
        %1162 = vmatmul.mubr.f32.gmra.mrb[0].mxu0 %v1057
        %v1163 = vpop.f32.mrb[0].mxu0
        %v1164 = vadd.f32 0.0, %v1163
        %v1165 = vpop.f32.mrb[0].mxu0
        %1166 = vmatprep.mubr.f32.mxu0 0.0
        %1167 = vmatmul.mubr.f32.gmra.mrb[0].mxu0 %v1058
        %v1168 = vpop.f32.mrb[0].mxu0
        %v1169 = vadd.f32 0.0, %v1168
        %v1170 = vpop.f32.mrb[0].mxu0
        %1171 = vmatprep.mubr.f32.mxu0 0.0
        %1172 = vmatmul.mubr.f32.gmra.mrb[0].mxu0 %v1059
        %v1173 = vpop.f32.mrb[0].mxu0
        %v1174 = vadd.f32 0.0, %v1173
        %v1175 = vpop.f32.mrb[0].mxu0
        %1176 = vmatprep.mubr.f32.mxu0 0.0
        %1177 = vmatmul.mubr.f32.gmra.mrb[0].mxu0 %v1060
        %v1178 = vpop.f32.mrb[0].mxu0
        %v1179 = vadd.f32 0.0, %v1178
        %v1180 = vpop.f32.mrb[0].mxu0
        %1181 = vmatprep.mubr.f32.mxu0 0.0
        %1182 = vmatmul.mubr.f32.gmra.mrb[0].mxu0 %v1061
        %v1183 = vpop.f32.mrb[0].mxu0
        %v1184 = vadd.f32 0.0, %v1183
        %v1185 = vpop.f32.mrb[0].mxu0
        %1186 = vmatprep.mubr.f32.mxu0 0.0
        %1187 = vmatmul.mubr.f32.gmra.mrb[0].mxu0 %v1062
        %v1188 = vpop.f32.mrb[0].mxu0
        %v1189 = vadd.f32 0.0, %v1188
        %v1190 = vpop.f32.mrb[0].mxu0
        %1191 = vmatprep.mubr.f32.mxu0 0.0
        %1192 = vmatmul.mubr.f32.gmra.mrb[0].mxu0 %v1063
        %v1193 = vpop.f32.mrb[0].mxu0
        %v1194 = vadd.f32 0.0, %v1193
        %v1195 = vpop.f32.mrb[0].mxu0
        %1196 = vmatprep.mubr.f32.mxu0 0.0
        %1197 = vmatmul.mubr.f32.gmra.mrb[0].mxu0 %v1064
        %v1198 = vpop.f32.mrb[0].mxu0
        %v1199 = vadd.f32 0.0, %v1198
        %v1200 = vpop.f32.mrb[0].mxu0
        %1201 = vmatprep.mubr.f32.mxu0 0.0
        %1202 = vmatmul.mubr.f32.gmra.mrb[0].mxu0 %v1065
        %v1203 = vpop.f32.mrb[0].mxu0
        %v1204 = vadd.f32 0.0, %v1203
        %v1205 = vpop.f32.mrb[0].mxu0
        %1206 = vmatprep.mubr.f32.mxu0 0.0
        %1207 = vmatmul.mubr.f32.gmra.mrb[0].mxu0 %v1066
        %v1208 = vpop.f32.mrb[0].mxu0
        %v1209 = vadd.f32 0.0, %v1208
        %v1210 = vpop.f32.mrb[0].mxu0
        %1211 = vmatprep.mubr.f32.mxu0 0.0
        %1212 = vmatmul.mubr.f32.gmra.mrb[0].mxu0 %v1067
        %v1213 = vpop.f32.mrb[0].mxu0
        %v1214 = vadd.f32 0.0, %v1213
        %v1215 = vpop.f32.mrb[0].mxu0
        %1216 = vmatprep.mubr.f32.mxu0 0.0
        %1217 = vmatmul.mubr.f32.gmra.mrb[0].mxu0 %v1068
        %v1218 = vpop.f32.mrb[0].mxu0
        %v1219 = vadd.f32 0.0, %v1218
        %v1220 = vpop.f32.mrb[0].mxu0
        %1221 = vmatprep.mubr.f32.mxu0 0.0
        %1222 = vmatmul.mubr.f32.gmra.mrb[0].mxu0 %v1069
        %v1223 = vpop.f32.mrb[0].mxu0
        %v1224 = vadd.f32 0.0, %v1223
        %v1225 = vpop.f32.mrb[0].mxu0
        %1226 = vmatprep.mubr.f32.mxu0 0.0
        %1227 = vmatmul.mubr.f32.gmra.mrb[0].mxu0 %v1070
        %v1228 = vpop.f32.mrb[0].mxu0
        %v1229 = vadd.f32 0.0, %v1228
        %v1230 = vpop.f32.mrb[0].mxu0
        %1231 = vdwg.mxu0
        %v1232 = vlaneseq
        %v1233 = vshrl.u32 %v1232, 7
        %v1234 = vadd.s32 %v1233, 8
        %v1235 = vadd.s32 %v1233, 16
        %v1236 = vadd.s32 %v1233, 24
        %v1237 = vadd.s32 %v1233, 32
        %v1238 = vadd.s32 %v1233, 40
        %v1239 = vadd.s32 %v1233, 48
        %v1240 = vadd.s32 %v1233, 56
        %v1241 = vadd.s32 %v1233, 64
        %v1242 = vadd.s32 %v1233, 72
        %v1243 = vadd.s32 %v1233, 80
        %v1244 = vadd.s32 %v1233, 88
        %v1245 = vadd.s32 %v1233, 96
        %v1246 = vadd.s32 %v1233, 104
        %v1247 = vadd.s32 %v1233, 112
        %v1248 = vadd.s32 %v1233, 120
        %s1249 = smul.u32 %s38, 256
        %s1250 = smul.u32 %s39, 128
        %s1251 = sadd.s32 %s1249, %s1250
        %v1252 = vstv %s1251
        %v1253 = vadd.s32 %v1233, %v1252
        %v1254 = vadd.s32 %v1234, %v1252
        %v1255 = vadd.s32 %v1235, %v1252
        %v1256 = vadd.s32 %v1236, %v1252
        %v1257 = vadd.s32 %v1237, %v1252
        %v1258 = vadd.s32 %v1238, %v1252
        %v1259 = vadd.s32 %v1239, %v1252
        %v1260 = vadd.s32 %v1240, %v1252
        %v1261 = vadd.s32 %v1241, %v1252
        %v1262 = vadd.s32 %v1242, %v1252
        %v1263 = vadd.s32 %v1243, %v1252
        %v1264 = vadd.s32 %v1244, %v1252
        %v1265 = vadd.s32 %v1245, %v1252
        %v1266 = vadd.s32 %v1246, %v1252
        %v1267 = vadd.s32 %v1247, %v1252
        %v1268 = vadd.s32 %v1248, %v1252
        %vm1269 = vcmp.lt.s32.totalorder %v1253, 300
        %vm1270 = vcmp.lt.s32.totalorder %v1254, 300
        %vm1271 = vcmp.lt.s32.totalorder %v1255, 300
        %vm1272 = vcmp.lt.s32.totalorder %v1256, 300
        %vm1273 = vcmp.lt.s32.totalorder %v1257, 300
        %vm1274 = vcmp.lt.s32.totalorder %v1258, 300
        %vm1275 = vcmp.lt.s32.totalorder %v1259, 300
        %vm1276 = vcmp.lt.s32.totalorder %v1260, 300
        %vm1277 = vcmp.lt.s32.totalorder %v1261, 300
        %vm1278 = vcmp.lt.s32.totalorder %v1262, 300
        %vm1279 = vcmp.lt.s32.totalorder %v1263, 300
        %vm1280 = vcmp.lt.s32.totalorder %v1264, 300
        %vm1281 = vcmp.lt.s32.totalorder %v1265, 300
        %vm1282 = vcmp.lt.s32.totalorder %v1266, 300
        %vm1283 = vcmp.lt.s32.totalorder %v1267, 300
        %vm1284 = vcmp.lt.s32.totalorder %v1268, 300
        %v1285 = vsel %vm1269, 1, 0
        %v1286 = vsel %vm1270, 1, 0
        %v1287 = vsel %vm1271, 1, 0
        %v1288 = vsel %vm1272, 1, 0
        %v1289 = vsel %vm1273, 1, 0
        %v1290 = vsel %vm1274, 1, 0
        %v1291 = vsel %vm1275, 1, 0
        %v1292 = vsel %vm1276, 1, 0
        %v1293 = vsel %vm1277, 1, 0
        %v1294 = vsel %vm1278, 1, 0
        %v1295 = vsel %vm1279, 1, 0
        %v1296 = vsel %vm1280, 1, 0
        %v1297 = vsel %vm1281, 1, 0
        %v1298 = vsel %vm1282, 1, 0
        %v1299 = vsel %vm1283, 1, 0
        %v1300 = vsel %vm1284, 1, 0
        %v1301 = vcvt.s32.f32 %v1285
        %v1302 = vcvt.s32.f32 %v1286
        %v1303 = vcvt.s32.f32 %v1287
        %v1304 = vcvt.s32.f32 %v1288
        %v1305 = vcvt.s32.f32 %v1289
        %v1306 = vcvt.s32.f32 %v1290
        %v1307 = vcvt.s32.f32 %v1291
        %v1308 = vcvt.s32.f32 %v1292
        %v1309 = vcvt.s32.f32 %v1293
        %v1310 = vcvt.s32.f32 %v1294
        %v1311 = vcvt.s32.f32 %v1295
        %v1312 = vcvt.s32.f32 %v1296
        %v1313 = vcvt.s32.f32 %v1297
        %v1314 = vcvt.s32.f32 %v1298
        %v1315 = vcvt.s32.f32 %v1299
        %v1316 = vcvt.s32.f32 %v1300
        %v1317 = vsub.f32 %v1154, %v517
        %v1318 = vsub.f32 %v1159, %v518
        %v1319 = vsub.f32 %v1164, %v519
        %v1320 = vsub.f32 %v1169, %v520
        %v1321 = vsub.f32 %v1174, %v521
        %v1322 = vsub.f32 %v1179, %v522
        %v1323 = vsub.f32 %v1184, %v523
        %v1324 = vsub.f32 %v1189, %v524
        %v1325 = vsub.f32 %v1194, %v525
        %v1326 = vsub.f32 %v1199, %v526
        %v1327 = vsub.f32 %v1204, %v527
        %v1328 = vsub.f32 %v1209, %v528
        %v1329 = vsub.f32 %v1214, %v529
        %v1330 = vsub.f32 %v1219, %v530
        %v1331 = vsub.f32 %v1224, %v531
        %v1332 = vsub.f32 %v1229, %v532
        %v1333 = vmul.f32 %v1317, %v1317
        %v1334 = vmul.f32 %v1318, %v1318
        %v1335 = vmul.f32 %v1319, %v1319
        %v1336 = vmul.f32 %v1320, %v1320
        %v1337 = vmul.f32 %v1321, %v1321
        %v1338 = vmul.f32 %v1322, %v1322
        %v1339 = vmul.f32 %v1323, %v1323
        %v1340 = vmul.f32 %v1324, %v1324
        %v1341 = vmul.f32 %v1325, %v1325
        %v1342 = vmul.f32 %v1326, %v1326
        %v1343 = vmul.f32 %v1327, %v1327
        %v1344 = vmul.f32 %v1328, %v1328
        %v1345 = vmul.f32 %v1329, %v1329
        %v1346 = vmul.f32 %v1330, %v1330
        %v1347 = vmul.f32 %v1331, %v1331
        %v1348 = vmul.f32 %v1332, %v1332
        %1349 = vadd.xlane.f32.xlu0 %v1333
        %v1350 = vpop.xlane.xlu0 %1349
        %1351 = vadd.xlane.f32.xlu0 %v1334
        %v1352 = vpop.xlane.xlu0 %1351
        %1353 = vadd.xlane.f32.xlu0 %v1335
        %v1354 = vpop.xlane.xlu0 %1353
        %1355 = vadd.xlane.f32.xlu0 %v1336
        %v1356 = vpop.xlane.xlu0 %1355
        %1357 = vadd.xlane.f32.xlu0 %v1337
        %v1358 = vpop.xlane.xlu0 %1357
        %1359 = vadd.xlane.f32.xlu0 %v1338
        %v1360 = vpop.xlane.xlu0 %1359
        %1361 = vadd.xlane.f32.xlu0 %v1339
        %v1362 = vpop.xlane.xlu0 %1361
        %1363 = vadd.xlane.f32.xlu0 %v1340
        %v1364 = vpop.xlane.xlu0 %1363
        %1365 = vadd.xlane.f32.xlu0 %v1341
        %v1366 = vpop.xlane.xlu0 %1365
        %1367 = vadd.xlane.f32.xlu0 %v1342
        %v1368 = vpop.xlane.xlu0 %1367
        %1369 = vadd.xlane.f32.xlu0 %v1343
        %v1370 = vpop.xlane.xlu0 %1369
        %1371 = vadd.xlane.f32.xlu0 %v1344
        %v1372 = vpop.xlane.xlu0 %1371
        %1373 = vadd.xlane.f32.xlu0 %v1345
        %v1374 = vpop.xlane.xlu0 %1373
        %1375 = vadd.xlane.f32.xlu0 %v1346
        %v1376 = vpop.xlane.xlu0 %1375
        %1377 = vadd.xlane.f32.xlu0 %v1347
        %v1378 = vpop.xlane.xlu0 %1377
        %1379 = vadd.xlane.f32.xlu0 %v1348
        %v1380 = vpop.xlane.xlu0 %1379
        %v1381 = vld [vmem:[%s506] sm:$0x1]
        %v1382 = vmul.f32 %v1350, %v1301
        %v1383 = vmul.f32 %v1352, %v1302
        %v1384 = vmul.f32 %v1354, %v1303
        %v1385 = vmul.f32 %v1356, %v1304
        %v1386 = vmul.f32 %v1358, %v1305
        %v1387 = vmul.f32 %v1360, %v1306
        %v1388 = vmul.f32 %v1362, %v1307
        %v1389 = vmul.f32 %v1364, %v1308
        %v1390 = vmul.f32 %v1366, %v1309
        %v1391 = vmul.f32 %v1368, %v1310
        %v1392 = vmul.f32 %v1370, %v1311
        %v1393 = vmul.f32 %v1372, %v1312
        %v1394 = vmul.f32 %v1374, %v1313
        %v1395 = vmul.f32 %v1376, %v1314
        %v1396 = vmul.f32 %v1378, %v1315
        %v1397 = vmul.f32 %v1380, %v1316
        %v1398 = vadd.f32 %v1382, %v1383
        %v1399 = vadd.f32 %v1398, %v1384
        %v1400 = vadd.f32 %v1399, %v1385
        %v1401 = vadd.f32 %v1400, %v1386
        %v1402 = vadd.f32 %v1401, %v1387
        %v1403 = vadd.f32 %v1402, %v1388
        %v1404 = vadd.f32 %v1403, %v1389
        %v1405 = vadd.f32 %v1404, %v1390
        %v1406 = vadd.f32 %v1405, %v1391
        %v1407 = vadd.f32 %v1406, %v1392
        %v1408 = vadd.f32 %v1407, %v1393
        %v1409 = vadd.f32 %v1408, %v1394
        %v1410 = vadd.f32 %v1409, %v1395
        %v1411 = vadd.f32 %v1410, %v1396
        %v1412 = vadd.f32 %v1411, %v1397
        %v1413 = vrot.slane %v1412, 4
        %v1414 = vadd.f32 %v1412, %v1413
        %v1415 = vrot.slane %v1414, 2
        %v1416 = vadd.f32 %v1414, %v1415
        %v1417 = vrot.slane %v1416, 1
        %v1418 = vadd.f32 %v1416, %v1417
        %v1419 = vadd.f32 %v1381, %v1418
        %vm1420 = vcmask 0
        %1421 = vst.msk [vmem:[%s506] sm:$0x1] %vm1420, %v1419
        %v1422 = vld [vmem:[%s422] sm:$0xff]
        %v1423 = vld [vmem:[%s422 + $0x8] sm:$0xff]
        %v1424 = vld [vmem:[%s422 + $0x10] sm:$0xff]
        %v1425 = vld [vmem:[%s422 + $0x18] sm:$0xff]
        %v1426 = vld [vmem:[%s422 + $0x20] sm:$0xff]
        %v1427 = vld [vmem:[%s422 + $0x28] sm:$0xff]
        %v1428 = vld [vmem:[%s422 + $0x30] sm:$0xff]
        %v1429 = vld [vmem:[%s422 + $0x38] sm:$0xff]
        %v1430 = vld [vmem:[%s422 + $0x40] sm:$0xff]
        %v1431 = vld [vmem:[%s422 + $0x48] sm:$0xff]
        %v1432 = vld [vmem:[%s422 + $0x50] sm:$0xff]
        %v1433 = vld [vmem:[%s422 + $0x58] sm:$0xff]
        %v1434 = vld [vmem:[%s422 + $0x60] sm:$0xff]
        %v1435 = vld [vmem:[%s422 + $0x68] sm:$0xff]
        %v1436 = vld [vmem:[%s422 + $0x70] sm:$0xff]
        %v1437 = vld [vmem:[%s422 + $0x78] sm:$0xff]
        %v1438 = vadd.f32 %v517, %v1154
        %v1439 = vadd.f32 %v518, %v1159
        %v1440 = vadd.f32 %v519, %v1164
        %v1441 = vadd.f32 %v520, %v1169
        %v1442 = vadd.f32 %v521, %v1174
        %v1443 = vadd.f32 %v522, %v1179
        %v1444 = vadd.f32 %v523, %v1184
        %v1445 = vadd.f32 %v524, %v1189
        %v1446 = vadd.f32 %v525, %v1194
        %v1447 = vadd.f32 %v526, %v1199
        %v1448 = vadd.f32 %v527, %v1204
        %v1449 = vadd.f32 %v528, %v1209
        %v1450 = vadd.f32 %v529, %v1214
        %v1451 = vadd.f32 %v530, %v1219
        %v1452 = vadd.f32 %v531, %v1224
        %v1453 = vadd.f32 %v532, %v1229
        %v1454 = vmul.f32 %v1438, %v1301
        %v1455 = vmul.f32 %v1439, %v1302
        %v1456 = vmul.f32 %v1440, %v1303
        %v1457 = vmul.f32 %v1441, %v1304
        %v1458 = vmul.f32 %v1442, %v1305
        %v1459 = vmul.f32 %v1443, %v1306
        %v1460 = vmul.f32 %v1444, %v1307
        %v1461 = vmul.f32 %v1445, %v1308
        %v1462 = vmul.f32 %v1446, %v1309
        %v1463 = vmul.f32 %v1447, %v1310
        %v1464 = vmul.f32 %v1448, %v1311
        %v1465 = vmul.f32 %v1449, %v1312
        %v1466 = vmul.f32 %v1450, %v1313
        %v1467 = vmul.f32 %v1451, %v1314
        %v1468 = vmul.f32 %v1452, %v1315
        %v1469 = vmul.f32 %v1453, %v1316
        %v1470 = vmul.f32 %v1454, %v1422
        %v1471 = vmul.f32 %v1455, %v1423
        %v1472 = vmul.f32 %v1456, %v1424
        %v1473 = vmul.f32 %v1457, %v1425
        %v1474 = vmul.f32 %v1458, %v1426
        %v1475 = vmul.f32 %v1459, %v1427
        %v1476 = vmul.f32 %v1460, %v1428
        %v1477 = vmul.f32 %v1461, %v1429
        %v1478 = vmul.f32 %v1462, %v1430
        %v1479 = vmul.f32 %v1463, %v1431
        %v1480 = vmul.f32 %v1464, %v1432
        %v1481 = vmul.f32 %v1465, %v1433
        %v1482 = vmul.f32 %v1466, %v1434
        %v1483 = vmul.f32 %v1467, %v1435
        %v1484 = vmul.f32 %v1468, %v1436
        %v1485 = vmul.f32 %v1469, %v1437
        %v1486 = vld [vmem:[%s497] sm:$0x1]
        %v1487 = vlaneseq
        %v1488 = vshrl.u32 %v1487, 7
        %v1489 = vsub.s32 0, %v1488
        %v1490 = vrot.slane %v1486, %v1489
        %vm1491 = vcmp.eq.s32.totalorder %v1233, %v1490
        %v1492 = vsel %vm1491, 1, 0
        %v1493 = vcvt.s32.f32 %v1492
        %v1494 = vld [vmem:[%s468] sm:$0x3]
        %1495 = vmatprep.subr.mxu0 0.0
        %1496 = vmatpush1.msra.mxu0 %v1470
        %1497 = vmatprep.subr.mxu0 0.0
        %1498 = vmatpush1.msra.mxu0 %v1471
        %1499 = vmatprep.subr.mxu0 0.0
        %1500 = vmatpush1.msra.mxu0 %v1472
        %1501 = vmatprep.subr.mxu0 0.0
        %1502 = vmatpush1.msra.mxu0 %v1473
        %1503 = vmatprep.subr.mxu0 0.0
        %1504 = vmatpush1.msra.mxu0 %v1474
        %1505 = vmatprep.subr.mxu0 0.0
        %1506 = vmatpush1.msra.mxu0 %v1475
        %1507 = vmatprep.subr.mxu0 0.0
        %1508 = vmatpush1.msra.mxu0 %v1476
        %1509 = vmatprep.subr.mxu0 0.0
        %1510 = vmatpush1.msra.mxu0 %v1477
        %1511 = vmatprep.subr.mxu0 0.0
        %1512 = vmatpush1.msra.mxu0 %v1478
        %1513 = vmatprep.subr.mxu0 0.0
        %1514 = vmatpush1.msra.mxu0 %v1479
        %1515 = vmatprep.subr.mxu0 0.0
        %1516 = vmatpush1.msra.mxu0 %v1480
        %1517 = vmatprep.subr.mxu0 0.0
        %1518 = vmatpush1.msra.mxu0 %v1481
        %1519 = vmatprep.subr.mxu0 0.0
        %1520 = vmatpush1.msra.mxu0 %v1482
        %1521 = vmatprep.subr.mxu0 0.0
        %1522 = vmatpush1.msra.mxu0 %v1483
        %1523 = vmatprep.subr.mxu0 0.0
        %1524 = vmatpush1.msra.mxu0 %v1484
        %1525 = vmatprep.subr.mxu0 0.0
        %1526 = vmatpush1.msra.mxu0 %v1485
        %1527 = vmatprep.subr.mxu0 0.0
        %1528 = vmatpush1.msra.mxu0 0.0
        %1529 = vmatprep.subr.mxu0 0.0
        %1530 = vmatpush1.msra.mxu0 0.0
        %1531 = vmatprep.subr.mxu0 0.0
        %1532 = vmatpush1.msra.mxu0 0.0
        %1533 = vmatprep.subr.mxu0 0.0
        %1534 = vmatpush1.msra.mxu0 0.0
        %1535 = vmatprep.subr.mxu0 0.0
        %1536 = vmatpush1.msra.mxu0 0.0
        %1537 = vmatprep.subr.mxu0 0.0
        %1538 = vmatpush1.msra.mxu0 0.0
        %1539 = vmatprep.subr.mxu0 0.0
        %1540 = vmatpush1.msra.mxu0 0.0
        %1541 = vmatprep.subr.mxu0 0.0
        %1542 = vmatpush1.msra.mxu0 0.0
        %1543 = vmatprep.subr.mxu0 0.0
        %1544 = vmatpush1.msra.mxu0 0.0
        %1545 = vmatprep.subr.mxu0 0.0
        %1546 = vmatpush1.msra.mxu0 0.0
        %1547 = vmatprep.subr.mxu0 0.0
        %1548 = vmatpush1.msra.mxu0 0.0
        %1549 = vmatprep.subr.mxu0 0.0
        %1550 = vmatpush1.msra.mxu0 0.0
        %1551 = vmatprep.subr.mxu0 0.0
        %1552 = vmatpush1.msra.mxu0 0.0
        %1553 = vmatprep.subr.mxu0 0.0
        %1554 = vmatpush1.msra.mxu0 0.0
        %1555 = vmatprep.subr.mxu0 0.0
        %1556 = vmatpush1.msra.mxu0 0.0
        %1557 = vmatprep.subr.mxu0 0.0
        %1558 = vmatpush1.msra.mxu0 0.0
        %1559 = vmatprep.mubr.f32.mxu0 0.0
        %1560 = vmatmul.mubr.f32.gmra.mrb[0].mxu0 %v1493
        %v1561 = vpop.f32.mrb[0].mxu0
        %v1562 = vadd.f32 0.0, %v1561
        %v1563 = vpop.f32.mrb[0].mxu0
        %1564 = vdwg.mxu0
        %v1565 = vadd.f32 %v1494, %v1562
        %1566 = vst [vmem:[%s468] sm:$0x3] %v1565
        %v1567 = vld [vmem:[%s475] sm:$0x3]
        %1568 = vmatprep.subr.mxu0 0.0
        %1569 = vmatpush1.msra.mxu0 %v1454
        %1570 = vmatprep.subr.mxu0 0.0
        %1571 = vmatpush1.msra.mxu0 %v1455
        %1572 = vmatprep.subr.mxu0 0.0
        %1573 = vmatpush1.msra.mxu0 %v1456
        %1574 = vmatprep.subr.mxu0 0.0
        %1575 = vmatpush1.msra.mxu0 %v1457
        %1576 = vmatprep.subr.mxu0 0.0
        %1577 = vmatpush1.msra.mxu0 %v1458
        %1578 = vmatprep.subr.mxu0 0.0
        %1579 = vmatpush1.msra.mxu0 %v1459
        %1580 = vmatprep.subr.mxu0 0.0
        %1581 = vmatpush1.msra.mxu0 %v1460
        %1582 = vmatprep.subr.mxu0 0.0
        %1583 = vmatpush1.msra.mxu0 %v1461
        %1584 = vmatprep.subr.mxu0 0.0
        %1585 = vmatpush1.msra.mxu0 %v1462
        %1586 = vmatprep.subr.mxu0 0.0
        %1587 = vmatpush1.msra.mxu0 %v1463
        %1588 = vmatprep.subr.mxu0 0.0
        %1589 = vmatpush1.msra.mxu0 %v1464
        %1590 = vmatprep.subr.mxu0 0.0
        %1591 = vmatpush1.msra.mxu0 %v1465
        %1592 = vmatprep.subr.mxu0 0.0
        %1593 = vmatpush1.msra.mxu0 %v1466
        %1594 = vmatprep.subr.mxu0 0.0
        %1595 = vmatpush1.msra.mxu0 %v1467
        %1596 = vmatprep.subr.mxu0 0.0
        %1597 = vmatpush1.msra.mxu0 %v1468
        %1598 = vmatprep.subr.mxu0 0.0
        %1599 = vmatpush1.msra.mxu0 %v1469
        %1600 = vmatprep.subr.mxu0 0.0
        %1601 = vmatpush1.msra.mxu0 0.0
        %1602 = vmatprep.subr.mxu0 0.0
        %1603 = vmatpush1.msra.mxu0 0.0
        %1604 = vmatprep.subr.mxu0 0.0
        %1605 = vmatpush1.msra.mxu0 0.0
        %1606 = vmatprep.subr.mxu0 0.0
        %1607 = vmatpush1.msra.mxu0 0.0
        %1608 = vmatprep.subr.mxu0 0.0
        %1609 = vmatpush1.msra.mxu0 0.0
        %1610 = vmatprep.subr.mxu0 0.0
        %1611 = vmatpush1.msra.mxu0 0.0
        %1612 = vmatprep.subr.mxu0 0.0
        %1613 = vmatpush1.msra.mxu0 0.0
        %1614 = vmatprep.subr.mxu0 0.0
        %1615 = vmatpush1.msra.mxu0 0.0
        %1616 = vmatprep.subr.mxu0 0.0
        %1617 = vmatpush1.msra.mxu0 0.0
        %1618 = vmatprep.subr.mxu0 0.0
        %1619 = vmatpush1.msra.mxu0 0.0
        %1620 = vmatprep.subr.mxu0 0.0
        %1621 = vmatpush1.msra.mxu0 0.0
        %1622 = vmatprep.subr.mxu0 0.0
        %1623 = vmatpush1.msra.mxu0 0.0
        %1624 = vmatprep.subr.mxu0 0.0
        %1625 = vmatpush1.msra.mxu0 0.0
        %1626 = vmatprep.subr.mxu0 0.0
        %1627 = vmatpush1.msra.mxu0 0.0
        %1628 = vmatprep.subr.mxu0 0.0
        %1629 = vmatpush1.msra.mxu0 0.0
        %1630 = vmatprep.subr.mxu0 0.0
        %1631 = vmatpush1.msra.mxu0 0.0
        %1632 = vmatprep.mubr.f32.mxu0 0.0
        %1633 = vmatmul.mubr.f32.gmra.mrb[0].mxu0 %v1493
        %v1634 = vpop.f32.mrb[0].mxu0
        %v1635 = vadd.f32 0.0, %v1634
        %v1636 = vpop.f32.mrb[0].mxu0
        %1637 = vdwg.mxu0
        %v1638 = vadd.f32 %v1567, %v1635
        %1639 = vst [vmem:[%s475] sm:$0x3] %v1638
        %v1640 = vld [vmem:[%s503] sm:$0x3]
        %vm1641 = vcmask 1041408
        %v1642 = vsel %vm1641, %v1493, 0.0
        %1643 = vadd.xlane.f32.xlu0 %v1642
        %v1644 = vpop.xlane.xlu0 %1643
        %v1645 = vadd.f32 %v1640, %v1644
        %vm1646 = vcmask 1024
        %1647 = vst.msk [vmem:[%s503] sm:$0x3] %vm1646, %v1645
        %s1648 = sand.u32 %s207, 1
        %s1649 = scalar_lea.sflag [#allocation4], %s1648
        %s1650 = sand.u32 %s207, 1
        %s1651 = smul.addr %s1650, 2
        %s1652 = scalar_lea.vmem [#allocation10], %s1651
        %s1653 = sand.u32 %s233, 1
        %s1654 = scalar_lea.sflag [#allocation12], %s1653
        %s1655 = sand.u32 %s233, 1
        %s1656 = smul.addr %s1655, 2
        %s1657 = scalar_lea.vmem [#allocation11], %s1656
        %p1658 = scmp.lt.s32.totalorder %s38, 1
        %s1659 = scalar_select %p1658, %s38, 1
        %s1660 = smul.addr %s1659, 2
        %s1661 = scalar_lea.vmem %s8, %s1660
        %p1662 = scmp.lt.s32.totalorder %s38, 1
        %s1663 = scalar_select %p1662, %s38, 1
        %s1664 = scalar_lea.vmem %s9, %s1663
        // Predicated region
        $region65: #{tpu_custom_call.1} parent=43 // pred_check
          %p1665 = pneg %p217
        $region66: #{tpu_custom_call.1} parent=43 // pred_check_branch
          %1667 = sbr.rel (%p1665) target = $region68
        $region67: #{tpu_custom_call.1} parent=43 // pred_region
          %s1669 = ssub.s32 32, 32
          %1670 = vsyncadd %s1649, %s1669
          %s1671 = smul.addr %s38, 32
          %s1672 = scalar_lea.hbm %s6, %s1671
          %s1674 = sshll.u32 %s1652, 4
          %s1675 = int_to_ptr.vmem [resolvable:$true] %s1674
          %1677 = dma.vmem_to_hbm [thread:$0]  %s1675, 32, %s1672, %s1649
        $region68: #{tpu_custom_call.1} parent=43 // pred_fallthru
          _
        // Predicated region
        $region69: #{tpu_custom_call.1} parent=43 // pred_check
          %p1678 = pneg %p243
        $region70: #{tpu_custom_call.1} parent=43 // pred_check_branch
          %1680 = sbr.rel (%p1678) target = $region72
        $region71: #{tpu_custom_call.1} parent=43 // pred_region
          %s1682 = ssub.s32 32, 32
          %1683 = vsyncadd %s1654, %s1682
          %s1684 = smul.addr %s38, 32
          %s1685 = scalar_lea.hbm %s7, %s1684
          %s1687 = sshll.u32 %s1657, 4
          %s1688 = int_to_ptr.vmem [resolvable:$true] %s1687
          %1690 = dma.vmem_to_hbm [thread:$0]  %s1688, 32, %s1685, %s1654
        $region72: #{tpu_custom_call.1} parent=43 // pred_fallthru
          _
        // Predicated region
        $region73: #{tpu_custom_call.1} parent=43 // pred_check
          %p1691 = pneg %p269
        $region74: #{tpu_custom_call.1} parent=43 // pred_check_branch
          %1693 = sbr.rel (%p1691) target = $region76
        $region75: #{tpu_custom_call.1} parent=43 // pred_region
          _
        $region76: #{tpu_custom_call.1} parent=43 // pred_fallthru
          _
        // Predicated region
        $region77: #{tpu_custom_call.1} parent=43 // pred_check
          %p1694 = pneg %p295
        $region78: #{tpu_custom_call.1} parent=43 // pred_check_branch
          %1696 = sbr.rel (%p1694) target = $region80
        $region79: #{tpu_custom_call.1} parent=43 // pred_region
          _
        $region80: #{tpu_custom_call.1} parent=43 // pred_fallthru
          _
      $region44: #{tpu_custom_call.1} parent=5 // pred_fallthru
        _
      %p1697 = scmp.le.s32.totalorder 2, %s29
      // Predicated region
      $region81: #{tpu_custom_call.1} parent=5 // pred_check
        %p1698 = pneg %p1697
      $region82: #{tpu_custom_call.1} parent=5 // pred_check_branch
        %1700 = sbr.rel (%p1698) target = $region84
      $region83: #{tpu_custom_call.1} parent=5 // pred_region
        %s1701 = ssub.s32 %s29, 2
        // Predicated region
        $region85: #{tpu_custom_call.1} parent=83 // pred_check
          %p1702 = pneg %p223
        $region86: #{tpu_custom_call.1} parent=83 // pred_check_branch
          %1704 = sbr.rel (%p1702) target = $region88
        $region87: #{tpu_custom_call.1} parent=83 // pred_region
          %s1705 = sand.u32 %s208, 1
          %s1706 = scalar_lea.sflag [#allocation4], %s1705
          %s1707 = sand.u32 %s208, 1
          %s1708 = smul.addr %s1707, 2
          %s1709 = scalar_lea.vmem [#allocation10], %s1708
          %1710 = dma.done %s1706, 32
        $region88: #{tpu_custom_call.1} parent=83 // pred_fallthru
          _
        // Predicated region
        $region89: #{tpu_custom_call.1} parent=83 // pred_check
          %p1711 = pneg %p249
        $region90: #{tpu_custom_call.1} parent=83 // pred_check_branch
          %1713 = sbr.rel (%p1711) target = $region92
        $region91: #{tpu_custom_call.1} parent=83 // pred_region
          %s1714 = sand.u32 %s234, 1
          %s1715 = scalar_lea.sflag [#allocation12], %s1714
          %s1716 = sand.u32 %s234, 1
          %s1717 = smul.addr %s1716, 2
          %s1718 = scalar_lea.vmem [#allocation11], %s1717
          %1719 = dma.done %s1715, 32
        $region92: #{tpu_custom_call.1} parent=83 // pred_fallthru
          _
        // Predicated region
        $region93: #{tpu_custom_call.1} parent=83 // pred_check
          %p1720 = pneg %p275
        $region94: #{tpu_custom_call.1} parent=83 // pred_check_branch
          %1722 = sbr.rel (%p1720) target = $region96
        $region95: #{tpu_custom_call.1} parent=83 // pred_region
          %p1723 = scmp.lt.s32.totalorder %s40, 1
          %s1724 = scalar_select %p1723, %s40, 1
          %s1725 = smul.addr %s1724, 2
          %s1726 = scalar_lea.vmem %s8, %s1725
        $region96: #{tpu_custom_call.1} parent=83 // pred_fallthru
          _
        // Predicated region
        $region97: #{tpu_custom_call.1} parent=83 // pred_check
          %p1727 = pneg %p301
        $region98: #{tpu_custom_call.1} parent=83 // pred_check_branch
          %1729 = sbr.rel (%p1727) target = $region100
        $region99: #{tpu_custom_call.1} parent=83 // pred_region
          %p1730 = scmp.lt.s32.totalorder %s40, 1
          %s1731 = scalar_select %p1730, %s40, 1
          %s1732 = scalar_lea.vmem %s9, %s1731
        $region100: #{tpu_custom_call.1} parent=83 // pred_fallthru
          _
      $region84: #{tpu_custom_call.1} parent=5 // pred_fallthru
        _
    $region6: #{tpu_custom_call.1} parent=1 // loop_footer
      %s33 = sadd.s32 1, %s29
    $region7: #{tpu_custom_call.1} parent=1 // loop_footer_branch
      %28 = sbr.rel target = $region3
    $region8: #{tpu_custom_call.1} parent=1 // loop_exit
      _
    %1733 = vsyncpa [#allocation3], 1
    %s1734 = scalar_lea.sflag [#allocation3], 1
    %1735 = vsyncpa %s1734, 1
    %1736 = vsyncpa [#allocation6], 1
    %s1737 = scalar_lea.sflag [#allocation6], 1
    %1738 = vsyncpa %s1737, 1
    %1739 = vsyncpa [#allocation9], 1
    %1740 = vsyncpa [#allocation4], 1
    %s1741 = scalar_lea.sflag [#allocation4], 1
    %1742 = vsyncpa %s1741, 1
    %1743 = vsyncpa [#allocation12], 1
    %s1744 = scalar_lea.sflag [#allocation12], 1
    %1745 = vsyncpa %s1744, 1

</llo_original>
